<compile_context>
chip_gen: v7x
topology: tpu7x:2x2x1
jax: 0.10.0
libtpu: 0.0.40
codegen_flags: <defaults>
</compile_context>

<pallas_src>
import jax
import jax.numpy as jnp
from jax.experimental import pallas as pl
from jax.experimental.pallas import tpu as pltpu

# ------------------------- torchaudio-default constants ----------------------
SAMPLE_RATE = 16000
N_FFT = 400
HOP = 200
N_MELS = 128
F_MIN = 0.0
F_MAX = SAMPLE_RATE / 2.0
TOP_DB = 80.0
AMIN = 1e-10

LANE = 128  # TPU lane width


def _round_up(v, m):
    return ((v + m - 1) // m) * m


# ----------------------- feature extraction (plain-JAX glue) -----------------
def _hz_to_mel(f):
    return 2595.0 * jnp.log10(1.0 + f / 700.0)


def _mel_to_hz(m):
    return 700.0 * (10.0 ** (m / 2595.0) - 1.0)


def _mel_filterbank(n_freqs, n_mels, f_min, f_max, sr):
    # torchaudio.functional.melscale_fbanks, mel_scale='htk', norm=None
    all_freqs = jnp.linspace(0.0, sr / 2.0, n_freqs)
    m_pts = jnp.linspace(_hz_to_mel(jnp.float32(f_min)),
                         _hz_to_mel(jnp.float32(f_max)), n_mels + 2)
    f_pts = _mel_to_hz(m_pts)
    f_diff = f_pts[1:] - f_pts[:-1]
    slopes = f_pts[None, :] - all_freqs[:, None]
    down = -slopes[:, :-2] / f_diff[:-1]
    up = slopes[:, 2:] / f_diff[1:]
    return jnp.maximum(0.0, jnp.minimum(down, up))  # (n_freqs, n_mels)


def _dct_matrix(n_mfcc, n_mels):
    # torchaudio.functional.create_dct(norm='ortho'), returned as (n_mfcc, n_mels)
    n = jnp.arange(n_mels, dtype=jnp.float32)
    k = jnp.arange(n_mfcc, dtype=jnp.float32)[:, None]
    dct = jnp.cos(jnp.pi / n_mels * (n[None, :] + 0.5) * k) * jnp.sqrt(2.0 / n_mels)
    dct = dct.at[0].multiply(1.0 / jnp.sqrt(2.0))
    return dct


def mfcc_jax(x, n_mfcc):
    """torchaudio.transforms.MFCC defaults: n_fft=400, hop=200, periodic hann,
    center=True reflect pad, power=2, 128 HTK mels, AmplitudeToDB(top_db=80),
    DCT-II 'ortho'.  Output: (B, n_mfcc, T)."""
    # TODO(synk): close to torchaudio numerics but not bit-exact.
    pad = N_FFT // 2
    xp = jnp.pad(x, ((0, 0), (pad, pad)), mode='reflect')
    num_frames = 1 + (xp.shape[1] - N_FFT) // HOP
    idx = jnp.arange(num_frames)[:, None] * HOP + jnp.arange(N_FFT)[None, :]
    frames = xp[:, idx]                                          # (B, T, n_fft)
    window = 0.5 - 0.5 * jnp.cos(2.0 * jnp.pi * jnp.arange(N_FFT) / N_FFT)
    spec = jnp.abs(jnp.fft.rfft(frames * window, axis=-1)) ** 2  # (B, T, F)
    spec = jnp.transpose(spec, (0, 2, 1))                        # (B, F, T)
    fb = _mel_filterbank(N_FFT // 2 + 1, N_MELS, F_MIN, F_MAX, SAMPLE_RATE)
    mel = jnp.einsum('bft,fm->bmt', spec, fb)                    # (B, n_mels, T)
    x_db = 10.0 * jnp.log10(jnp.maximum(mel, AMIN))              # db_multiplier = 0
    x_db = jnp.maximum(x_db, jnp.max(x_db, axis=(1, 2), keepdims=True) - TOP_DB)
    dct = _dct_matrix(n_mfcc, N_MELS)
    return jnp.einsum('bmt,cm->bct', x_db, dct)                  # (B, n_mfcc, T)


def compute_deltas(x, win_length=5):
    """torchaudio.transforms.ComputeDeltas (win_length=5, replicate padding)."""
    n = (win_length - 1) // 2
    denom = n * (n + 1) * (2 * n + 1) / 3.0
    xp = jnp.pad(x, ((0, 0), (0, 0), (n, n)), mode='edge')
    T = x.shape[-1]
    out = jnp.zeros_like(x)
    for i in range(-n, n + 1):
        out = out + float(i) * xp[..., i + n:i + n + T]
    return out / denom


# ------------------------------ Pallas MLP kernel -----------------------------
def _make_mlp_kernel(tm, n_ctx, penu):
    """Fused 4-layer MLP with in-kernel context gather.

    h1 is built as a sum over the n_ctx context shifts directly from the compact
    feature window (the 351-wide context row is never materialized):
        h1[t] = relu( sum_k feats_ext[t+k] @ W1[k] + b1 )
    """
    row_align = 128 if tm % 128 == 0 else 8

    def dense_relu(h, w_ref, b_ref):
        z = jnp.dot(h.astype(jnp.bfloat16), w_ref[...],
                    preferred_element_type=jnp.float32) + b_ref[...]
        return jnp.maximum(z, 0.0)

    def kernel(f_ref, w1_ref, b1_ref, w2_ref, b2_ref, w3_ref, b3_ref, *rest):
        if penu:
            (o_ref,) = rest
        else:
            w4_ref, b4_ref, o_ref = rest

        base = pl.multiple_of(pl.program_id(1) * tm, row_align)
        H = b1_ref.shape[-1]

        # fcxh1: shift-decomposed first layer (unrolled, 9 small MXU passes).
        acc = jnp.zeros((tm, H), jnp.float32)
        for k in range(n_ctx):
            x_k = f_ref[0, pl.ds(base + k, tm), :].astype(jnp.bfloat16)
            acc = acc + jnp.dot(x_k, w1_ref[k], preferred_element_type=jnp.float32)
        h = jnp.maximum(acc + b1_ref[...], 0.0)   # relu(fcxh1)

        h = dense_relu(h, w2_ref, b2_ref)         # relu(fch1h2)
        h = dense_relu(h, w3_ref, b3_ref)         # relu(fch1h3)

        if penu:
            o_ref[0, :, :] = h
        else:
            y = jnp.dot(h.astype(jnp.bfloat16), w4_ref[...],
                        preferred_element_type=jnp.float32) + b4_ref[...]  # fch2y
            o_ref[0, :, :] = y

    return kernel


def _pick_tm(T, tm_max=1024, min_steps=4):
    """Row tile: big for long utterances (amortize the ~0.35us/step overhead and
    feed both v7x TensorCores with >=min_steps time tiles), shrunk for short ones
    so we never compute on more than ~7 rows of padding."""
    if T <= 128:
        return max(8, _round_up(T, 8))
    return max(128, min(tm_max, _round_up(-(-T // min_steps), 128)))


def mlp_context_pallas(feats, prepared, left, right, *, penu=False,
                       tm_max=1024, min_time_tiles=4):
    """feats: compact (B, T, C=3*n_mfcc) float32 features. Returns (B, T, keep)."""
    w1, b1, w2, b2, w3, b3, w4, b4 = prepared['weights']
    B, T, C = feats.shape
    n_ctx = left + right + 1
    assert w1.shape[0] == n_ctx
    C_pad, H = w1.shape[1], w1.shape[2]
    S = w4.shape[1]

    tm = _pick_tm(T, tm_max, min_time_tiles)
    n_tiles = -(-T // tm)
    T_ext_pad = n_tiles * tm + left + right

    # Compact circular halo (matches the torch `roll` wrap semantics exactly):
    # feats_ext[:, j] = feats[:, (j - left) mod T]; then zero-pad the time axis
    # so every tile's (tm + left + right) window is in bounds, and the feature
    # axis up to C_pad (zero weight rows make the padding inert).
    idx = jnp.arange(-left, T + right) % T
    ext = jnp.take(feats.astype(jnp.float32), idx, axis=1)          # (B, T+L+R, C)
    ext = jnp.pad(ext, ((0, 0), (0, T_ext_pad - (T + left + right)),
                        (0, C_pad - C)))

    if penu:
        OW, keep = H, prepared['hidden']
    else:
        OW, keep = S, prepared['num_states']

    kernel = _make_mlp_kernel(tm, n_ctx, penu)

    f_spec = pl.BlockSpec((1, T_ext_pad, C_pad), lambda b, i: (b, 0, 0))
    w1_spec = pl.BlockSpec((n_ctx, C_pad, H), lambda b, i: (0, 0, 0))

    def const2d(shape):
        return pl.BlockSpec(shape, lambda b, i: (0, 0))

    out_spec = pl.BlockSpec((1, tm, OW), lambda b, i: (b, i, 0))

    if penu:
        operands = (ext, w1, b1, w2, b2, w3, b3)
        in_specs = [f_spec, w1_spec, const2d((1, H)),
                    const2d((H, H)), const2d((1, H)),
                    const2d((H, H)), const2d((1, H))]
    else:
        operands = (ext, w1, b1, w2, b2, w3, b3, w4, b4)
        in_specs = [f_spec, w1_spec, const2d((1, H)),
                    const2d((H, H)), const2d((1, H)),
                    const2d((H, H)), const2d((1, H)),
                    const2d((H, S)), const2d((1, S))]

    rows = B * n_tiles * tm
    flops = 2 * rows * (n_ctx * C_pad * H + 2 * H * H + (0 if penu else H * OW))
    weight_bytes = sum(int(w.size) * w.dtype.itemsize for w in operands[1:])
    bytes_accessed = int(ext.size) * 4 + weight_bytes + B * T * OW * 4

    out = pl.pallas_call(
        kernel,
        out_shape=jax.ShapeDtypeStruct((B, T, OW), jnp.float32),
        grid=(B, n_tiles),
        in_specs=in_specs,
        out_specs=out_spec,
        compiler_params=pltpu.CompilerParams(
            dimension_semantics=("parallel", "parallel")),
        cost_estimate=pl.CostEstimate(flops=int(flops), transcendentals=0,
                                      bytes_accessed=int(bytes_accessed)),
    )(*operands)
    return out[:, :, :keep]


# ------------------------------ full forward pass -----------------------------
def three_layer_forward(x, prepared, n_mfcc, left_context, right_context, penu=False):
    x = x / 0.5648193359375
    m = mfcc_jax(x, n_mfcc)                                  # (B, n_mfcc, T)
    d = compute_deltas(m)
    dd = compute_deltas(d)
    feats = jnp.concatenate([m, d, dd], axis=1)              # (B, 3*n_mfcc, T)
    feats = jnp.transpose(feats, (0, 2, 1))                  # (B, T, 3*n_mfcc)
    return mlp_context_pallas(feats, prepared, left_context, right_context,
                              penu=penu)


# ------------------------------ parameter prep --------------------------------
def linear_init(key, fan_in, fan_out):
    """PyTorch nn.Linear default init: U(-1/sqrt(fan_in), 1/sqrt(fan_in)).
    Stored as (in, out) / (1, out) for x @ W + b."""
    kw, kb = jax.random.split(key)
    bound = 1.0 / (fan_in ** 0.5)
    w = jax.random.uniform(kw, (fan_out, fan_in), jnp.float32, -bound, bound)
    b = jax.random.uniform(kb, (fan_out,), jnp.float32, -bound, bound)
    return w.T, b[None, :]


def prepare_params(params, n_ctx):
    """Re-pack fcxh1 by context shift and zero-pad all widths.

    add_context flattens as position = c*n_ctx + k (feature-major), so
    w1[c*n_ctx + k, h] -> w1s[k, c, h].  Padded rows/cols are zero, so they stay
    exactly zero through ReLU and the final slice removes them."""
    (w1, b1), (w2, b2), (w3, b3), (w4, b4) = params
    din, hid = w1.shape
    C = din // n_ctx
    assert C * n_ctx == din
    num_states = w4.shape[1]
    C_pad = _round_up(C, 16)
    H = _round_up(hid, LANE)
    S = _round_up(num_states, LANE)

    w1s = w1.reshape(C, n_ctx, hid).transpose(1, 0, 2)            # (n_ctx, C, hid)
    w1s = jnp.pad(w1s, ((0, 0), (0, C_pad - C), (0, H - hid))).astype(jnp.bfloat16)

    def pad_w(w, rows, cols):
        return jnp.pad(w, ((0, rows - w.shape[0]),
                           (0, cols - w.shape[1]))).astype(jnp.bfloat16)

    def pad_b(b, cols):
        return jnp.pad(b, ((0, 0), (0, cols - b.shape[1]))).astype(jnp.float32)

    weights = (w1s, pad_b(b1, H),
               pad_w(w2, H, H), pad_b(b2, H),
               pad_w(w3, H, H), pad_b(b3, H),
               pad_w(w4, H, S), pad_b(b4, S))
    return {'weights': weights, 'hidden': hid, 'num_states': num_states,
            'din': din, 'feat_width': C, 'n_ctx': n_ctx}


# ------------------------- pure-JAX reference (self-check) --------------------
def reference_forward(x, params, n_mfcc, left, right, penu=False):
    """Explicit add_context (roll/stack) + dense chain, with the same bf16 casts
    as the kernel, used only to validate the in-kernel context gather."""
    (w1, b1), (w2, b2), (w3, b3), (w4, b4) = params
    x = x / 0.5648193359375
    m = mfcc_jax(x, n_mfcc)
    d = compute_deltas(m)
    dd = compute_deltas(d)
    feats = jnp.transpose(jnp.concatenate([m, d, dd], axis=1), (0, 2, 1))
    shifts = list(range(left, 0, -1)) + [0] + [-i for i in range(1, right + 1)]
    ctx = jnp.stack([jnp.roll(feats, s, axis=1) for s in shifts], axis=3)
    B, T, C, K = ctx.shape
    h = ctx.reshape(B, T, C * K)

    def dense(h, w, b, relu=True):
        z = jnp.dot(h.astype(jnp.bfloat16), w.astype(jnp.bfloat16),
                    preferred_element_type=jnp.float32) + b
        return jnp.maximum(z, 0.0) if relu else z

    h = dense(h, w1, b1)
    h = dense(h, w2, b2)
    h = dense(h, w3, b3)
    return h if penu else dense(h, w4, b4, relu=False)


if __name__ == "__main__":
    key = jax.random.PRNGKey(0)
    feature_parameters = dict(sampling_rate=SAMPLE_RATE, hop_size=HOP / SAMPLE_RATE,
                              num_ceps=13, left_context=4, right_context=4)
    num_states = 30  # stands in for hmm.get_num_states()

    n_mfcc = feature_parameters['num_ceps']
    lc = feature_parameters['left_context']
    rc = feature_parameters['right_context']
    n_ctx = lc + rc + 1
    d_in = 3 * n_mfcc * n_ctx   # 351

    k_in, k1, k2, k3, k4 = jax.random.split(key, 5)
    params = (linear_init(k1, d_in, 100),        # fcxh1
              linear_init(k2, 100, 100),         # fch1h2
              linear_init(k3, 100, 100),         # fch1h3
              linear_init(k4, 100, num_states))  # fch2y
    prepared = prepare_params(params, n_ctx)

    B, L = 2, 3200                               # small raw-audio input
    x = jax.random.normal(k_in, (B, L), dtype=jnp.float32)

    fwd = jax.jit(lambda xx: three_layer_forward(xx, prepared, n_mfcc, lc, rc,
                                                 penu=False))
    y = fwd(x)
    jax.block_until_ready(y)
    T = 1 + L // HOP
    assert y.shape == (B, T, num_states), y.shape
    assert bool(jnp.all(jnp.isfinite(y)))

    # Validate the in-kernel context gather / weight re-packing against an
    # explicit add_context reference with matching bf16 casts.
    y_ref = reference_forward(x, params, n_mfcc, lc, rc, penu=False)
    err = float(jnp.max(jnp.abs(y - y_ref)) / (jnp.max(jnp.abs(y_ref)) + 1e-6))
    assert err < 2e-2, f"kernel/reference mismatch: normalized max err {err}"

    # also exercise the penultimate (penu=True) path once
    h3 = three_layer_forward(x, prepared, n_mfcc, lc, rc, penu=True)
    jax.block_until_ready(h3)
    assert h3.shape == (B, T, 100), h3.shape
    assert bool(jnp.all(jnp.isfinite(h3)))

    print("KERNEL_OK")
</pallas_src>

<mosaic_0001>
module attributes {stable_mosaic.version = 11 : i64} {
  func.func private @main(%arg0: i32) attributes {dimension_semantics = [#tpu.dimension_semantics<core_parallel>], iteration_bounds = array<i64: 2>, tpu.core_type = #tpu.core_type<sc_scalar_subcore>, window_params = []} {
    return
  }
}

module attributes {stable_mosaic.version = 11 : i64} {
  func.func private @main(%arg0: i32) attributes {dimension_semantics = [#tpu.dimension_semantics<core_parallel>], iteration_bounds = array<i64: 2>, tpu.core_type = #tpu.core_type<sc_scalar_subcore>, window_params = []} {
    return
  }
}

module attributes {stable_mosaic.version = 11 : i64} {
  func.func @kernel(%arg0: i32, %arg1: i32, %arg2: memref<1x32x48xf32, #tpu.memory_space<vmem>>, %arg3: memref<9x48x128xbf16, #tpu.memory_space<vmem>>, %arg4: memref<1x128xf32, #tpu.memory_space<vmem>>, %arg5: memref<128x128xbf16, #tpu.memory_space<vmem>>, %arg6: memref<1x128xf32, #tpu.memory_space<vmem>>, %arg7: memref<128x128xbf16, #tpu.memory_space<vmem>>, %arg8: memref<1x128xf32, #tpu.memory_space<vmem>>, %arg9: memref<128x128xbf16, #tpu.memory_space<vmem>>, %arg10: memref<1x128xf32, #tpu.memory_space<vmem>>, %arg11: memref<1x24x128xf32, #tpu.memory_space<vmem>>) attributes {dimension_semantics = [#tpu.dimension_semantics<parallel>, #tpu.dimension_semantics<parallel>], iteration_bounds = array<i64: 2, 1>, scalar_prefetch = 0 : i64, scratch_operands = 0 : i64, tpu.core_type = #tpu.core_type<tc>, window_params = [{transform_indices = @transform_0, window_bounds = array<i64: 1, 32, 48>}, {pipeline_mode = #tpu.pipeline_mode<synchronous>, transform_indices = @transform_1, window_bounds = array<i64: 9, 48, 128>}, {pipeline_mode = #tpu.pipeline_mode<synchronous>, transform_indices = @transform_2, window_bounds = array<i64: 1, 128>}, {pipeline_mode = #tpu.pipeline_mode<synchronous>, transform_indices = @transform_3, window_bounds = array<i64: 128, 128>}, {pipeline_mode = #tpu.pipeline_mode<synchronous>, transform_indices = @transform_4, window_bounds = array<i64: 1, 128>}, {pipeline_mode = #tpu.pipeline_mode<synchronous>, transform_indices = @transform_5, window_bounds = array<i64: 128, 128>}, {pipeline_mode = #tpu.pipeline_mode<synchronous>, transform_indices = @transform_6, window_bounds = array<i64: 1, 128>}, {pipeline_mode = #tpu.pipeline_mode<synchronous>, transform_indices = @transform_7, window_bounds = array<i64: 128, 128>}, {pipeline_mode = #tpu.pipeline_mode<synchronous>, transform_indices = @transform_8, window_bounds = array<i64: 1, 128>}, {transform_indices = @transform_9, window_bounds = array<i64: 1, 24, 128>}]} {
    %c24_i32 = arith.constant 24 : i32
    %0 = arith.muli %arg1, %c24_i32 : i32
    %1 = tpu.assume_multiple %0, 8 : i32
    %cst = arith.constant 0.000000e+00 : f32
    %2 = vector.broadcast %cst : f32 to vector<24x128xf32>
    %c0_i32 = arith.constant 0 : i32
    %3 = arith.addi %1, %c0_i32 : i32
    %c0 = arith.constant 0 : index
    %4 = arith.index_cast %3 : i32 to index
    %c0_0 = arith.constant 0 : index
    %5 = vector.load %arg2[%c0, %4, %c0_0] : memref<1x32x48xf32, #tpu.memory_space<vmem>>, vector<1x24x48xf32>
    %6 = vector.shape_cast %5 : vector<1x24x48xf32> to vector<24x48xf32>
    %7 = arith.truncf %6 : vector<24x48xf32> to vector<24x48xbf16>
    %c0_1 = arith.constant 0 : index
    %c0_2 = arith.constant 0 : index
    %c0_3 = arith.constant 0 : index
    %8 = vector.load %arg3[%c0_1, %c0_2, %c0_3] : memref<9x48x128xbf16, #tpu.memory_space<vmem>>, vector<1x48x128xbf16>
    %9 = vector.shape_cast %8 : vector<1x48x128xbf16> to vector<48x128xbf16>
    %cst_4 = arith.constant dense<0.000000e+00> : vector<24x128xf32>
    %10 = tpu.matmul %7, %9, %cst_4 {dimension_numbers = #tpu.dot_dimension_numbers<[1], [0], [0], [1], [0, 0, 1, 1], [], []>} : vector<24x48xbf16>, vector<48x128xbf16>, vector<24x128xf32> -> vector<24x128xf32>
    %11 = arith.addf %2, %10 : vector<24x128xf32>
    %c1_i32 = arith.constant 1 : i32
    %12 = arith.addi %1, %c1_i32 : i32
    %c0_5 = arith.constant 0 : index
    %13 = arith.index_cast %12 : i32 to index
    %c0_6 = arith.constant 0 : index
    %14 = vector.load %arg2[%c0_5, %13, %c0_6] : memref<1x32x48xf32, #tpu.memory_space<vmem>>, vector<1x24x48xf32>
    %15 = vector.shape_cast %14 : vector<1x24x48xf32> to vector<24x48xf32>
    %16 = arith.truncf %15 : vector<24x48xf32> to vector<24x48xbf16>
    %c1 = arith.constant 1 : index
    %c0_7 = arith.constant 0 : index
    %c0_8 = arith.constant 0 : index
    %17 = vector.load %arg3[%c1, %c0_7, %c0_8] : memref<9x48x128xbf16, #tpu.memory_space<vmem>>, vector<1x48x128xbf16>
    %18 = vector.shape_cast %17 : vector<1x48x128xbf16> to vector<48x128xbf16>
    %cst_9 = arith.constant dense<0.000000e+00> : vector<24x128xf32>
    %19 = tpu.matmul %16, %18, %cst_9 {dimension_numbers = #tpu.dot_dimension_numbers<[1], [0], [0], [1], [0, 0, 1, 1], [], []>} : vector<24x48xbf16>, vector<48x128xbf16>, vector<24x128xf32> -> vector<24x128xf32>
    %20 = arith.addf %11, %19 : vector<24x128xf32>
    %c2_i32 = arith.constant 2 : i32
    %21 = arith.addi %1, %c2_i32 : i32
    %c0_10 = arith.constant 0 : index
    %22 = arith.index_cast %21 : i32 to index
    %c0_11 = arith.constant 0 : index
    %23 = vector.load %arg2[%c0_10, %22, %c0_11] : memref<1x32x48xf32, #tpu.memory_space<vmem>>, vector<1x24x48xf32>
    %24 = vector.shape_cast %23 : vector<1x24x48xf32> to vector<24x48xf32>
    %25 = arith.truncf %24 : vector<24x48xf32> to vector<24x48xbf16>
    %c2 = arith.constant 2 : index
    %c0_12 = arith.constant 0 : index
    %c0_13 = arith.constant 0 : index
    %26 = vector.load %arg3[%c2, %c0_12, %c0_13] : memref<9x48x128xbf16, #tpu.memory_space<vmem>>, vector<1x48x128xbf16>
    %27 = vector.shape_cast %26 : vector<1x48x128xbf16> to vector<48x128xbf16>
    %cst_14 = arith.constant dense<0.000000e+00> : vector<24x128xf32>
    %28 = tpu.matmul %25, %27, %cst_14 {dimension_numbers = #tpu.dot_dimension_numbers<[1], [0], [0], [1], [0, 0, 1, 1], [], []>} : vector<24x48xbf16>, vector<48x128xbf16>, vector<24x128xf32> -> vector<24x128xf32>
    %29 = arith.addf %20, %28 : vector<24x128xf32>
    %c3_i32 = arith.constant 3 : i32
    %30 = arith.addi %1, %c3_i32 : i32
    %c0_15 = arith.constant 0 : index
    %31 = arith.index_cast %30 : i32 to index
    %c0_16 = arith.constant 0 : index
    %32 = vector.load %arg2[%c0_15, %31, %c0_16] : memref<1x32x48xf32, #tpu.memory_space<vmem>>, vector<1x24x48xf32>
    %33 = vector.shape_cast %32 : vector<1x24x48xf32> to vector<24x48xf32>
    %34 = arith.truncf %33 : vector<24x48xf32> to vector<24x48xbf16>
    %c3 = arith.constant 3 : index
    %c0_17 = arith.constant 0 : index
    %c0_18 = arith.constant 0 : index
    %35 = vector.load %arg3[%c3, %c0_17, %c0_18] : memref<9x48x128xbf16, #tpu.memory_space<vmem>>, vector<1x48x128xbf16>
    %36 = vector.shape_cast %35 : vector<1x48x128xbf16> to vector<48x128xbf16>
    %cst_19 = arith.constant dense<0.000000e+00> : vector<24x128xf32>
    %37 = tpu.matmul %34, %36, %cst_19 {dimension_numbers = #tpu.dot_dimension_numbers<[1], [0], [0], [1], [0, 0, 1, 1], [], []>} : vector<24x48xbf16>, vector<48x128xbf16>, vector<24x128xf32> -> vector<24x128xf32>
    %38 = arith.addf %29, %37 : vector<24x128xf32>
    %c4_i32 = arith.constant 4 : i32
    %39 = arith.addi %1, %c4_i32 : i32
    %c0_20 = arith.constant 0 : index
    %40 = arith.index_cast %39 : i32 to index
    %c0_21 = arith.constant 0 : index
    %41 = vector.load %arg2[%c0_20, %40, %c0_21] : memref<1x32x48xf32, #tpu.memory_space<vmem>>, vector<1x24x48xf32>
    %42 = vector.shape_cast %41 : vector<1x24x48xf32> to vector<24x48xf32>
    %43 = arith.truncf %42 : vector<24x48xf32> to vector<24x48xbf16>
    %c4 = arith.constant 4 : index
    %c0_22 = arith.constant 0 : index
    %c0_23 = arith.constant 0 : index
    %44 = vector.load %arg3[%c4, %c0_22, %c0_23] : memref<9x48x128xbf16, #tpu.memory_space<vmem>>, vector<1x48x128xbf16>
    %45 = vector.shape_cast %44 : vector<1x48x128xbf16> to vector<48x128xbf16>
    %cst_24 = arith.constant dense<0.000000e+00> : vector<24x128xf32>
    %46 = tpu.matmul %43, %45, %cst_24 {dimension_numbers = #tpu.dot_dimension_numbers<[1], [0], [0], [1], [0, 0, 1, 1], [], []>} : vector<24x48xbf16>, vector<48x128xbf16>, vector<24x128xf32> -> vector<24x128xf32>
    %47 = arith.addf %38, %46 : vector<24x128xf32>
    %c5_i32 = arith.constant 5 : i32
    %48 = arith.addi %1, %c5_i32 : i32
    %c0_25 = arith.constant 0 : index
    %49 = arith.index_cast %48 : i32 to index
    %c0_26 = arith.constant 0 : index
    %50 = vector.load %arg2[%c0_25, %49, %c0_26] : memref<1x32x48xf32, #tpu.memory_space<vmem>>, vector<1x24x48xf32>
    %51 = vector.shape_cast %50 : vector<1x24x48xf32> to vector<24x48xf32>
    %52 = arith.truncf %51 : vector<24x48xf32> to vector<24x48xbf16>
    %c5 = arith.constant 5 : index
    %c0_27 = arith.constant 0 : index
    %c0_28 = arith.constant 0 : index
    %53 = vector.load %arg3[%c5, %c0_27, %c0_28] : memref<9x48x128xbf16, #tpu.memory_space<vmem>>, vector<1x48x128xbf16>
    %54 = vector.shape_cast %53 : vector<1x48x128xbf16> to vector<48x128xbf16>
    %cst_29 = arith.constant dense<0.000000e+00> : vector<24x128xf32>
    %55 = tpu.matmul %52, %54, %cst_29 {dimension_numbers = #tpu.dot_dimension_numbers<[1], [0], [0], [1], [0, 0, 1, 1], [], []>} : vector<24x48xbf16>, vector<48x128xbf16>, vector<24x128xf32> -> vector<24x128xf32>
    %56 = arith.addf %47, %55 : vector<24x128xf32>
    %c6_i32 = arith.constant 6 : i32
    %57 = arith.addi %1, %c6_i32 : i32
    %c0_30 = arith.constant 0 : index
    %58 = arith.index_cast %57 : i32 to index
    %c0_31 = arith.constant 0 : index
    %59 = vector.load %arg2[%c0_30, %58, %c0_31] : memref<1x32x48xf32, #tpu.memory_space<vmem>>, vector<1x24x48xf32>
    %60 = vector.shape_cast %59 : vector<1x24x48xf32> to vector<24x48xf32>
    %61 = arith.truncf %60 : vector<24x48xf32> to vector<24x48xbf16>
    %c6 = arith.constant 6 : index
    %c0_32 = arith.constant 0 : index
    %c0_33 = arith.constant 0 : index
    %62 = vector.load %arg3[%c6, %c0_32, %c0_33] : memref<9x48x128xbf16, #tpu.memory_space<vmem>>, vector<1x48x128xbf16>
    %63 = vector.shape_cast %62 : vector<1x48x128xbf16> to vector<48x128xbf16>
    %cst_34 = arith.constant dense<0.000000e+00> : vector<24x128xf32>
    %64 = tpu.matmul %61, %63, %cst_34 {dimension_numbers = #tpu.dot_dimension_numbers<[1], [0], [0], [1], [0, 0, 1, 1], [], []>} : vector<24x48xbf16>, vector<48x128xbf16>, vector<24x128xf32> -> vector<24x128xf32>
    %65 = arith.addf %56, %64 : vector<24x128xf32>
    %c7_i32 = arith.constant 7 : i32
    %66 = arith.addi %1, %c7_i32 : i32
    %c0_35 = arith.constant 0 : index
    %67 = arith.index_cast %66 : i32 to index
    %c0_36 = arith.constant 0 : index
    %68 = vector.load %arg2[%c0_35, %67, %c0_36] : memref<1x32x48xf32, #tpu.memory_space<vmem>>, vector<1x24x48xf32>
    %69 = vector.shape_cast %68 : vector<1x24x48xf32> to vector<24x48xf32>
    %70 = arith.truncf %69 : vector<24x48xf32> to vector<24x48xbf16>
    %c7 = arith.constant 7 : index
    %c0_37 = arith.constant 0 : index
    %c0_38 = arith.constant 0 : index
    %71 = vector.load %arg3[%c7, %c0_37, %c0_38] : memref<9x48x128xbf16, #tpu.memory_space<vmem>>, vector<1x48x128xbf16>
    %72 = vector.shape_cast %71 : vector<1x48x128xbf16> to vector<48x128xbf16>
    %cst_39 = arith.constant dense<0.000000e+00> : vector<24x128xf32>
    %73 = tpu.matmul %70, %72, %cst_39 {dimension_numbers = #tpu.dot_dimension_numbers<[1], [0], [0], [1], [0, 0, 1, 1], [], []>} : vector<24x48xbf16>, vector<48x128xbf16>, vector<24x128xf32> -> vector<24x128xf32>
    %74 = arith.addf %65, %73 : vector<24x128xf32>
    %c8_i32 = arith.constant 8 : i32
    %75 = arith.addi %1, %c8_i32 : i32
    %c0_40 = arith.constant 0 : index
    %76 = arith.index_cast %75 : i32 to index
    %c0_41 = arith.constant 0 : index
    %77 = vector.load %arg2[%c0_40, %76, %c0_41] : memref<1x32x48xf32, #tpu.memory_space<vmem>>, vector<1x24x48xf32>
    %78 = vector.shape_cast %77 : vector<1x24x48xf32> to vector<24x48xf32>
    %79 = arith.truncf %78 : vector<24x48xf32> to vector<24x48xbf16>
    %c8 = arith.constant 8 : index
    %c0_42 = arith.constant 0 : index
    %c0_43 = arith.constant 0 : index
    %80 = vector.load %arg3[%c8, %c0_42, %c0_43] : memref<9x48x128xbf16, #tpu.memory_space<vmem>>, vector<1x48x128xbf16>
    %81 = vector.shape_cast %80 : vector<1x48x128xbf16> to vector<48x128xbf16>
    %cst_44 = arith.constant dense<0.000000e+00> : vector<24x128xf32>
    %82 = tpu.matmul %79, %81, %cst_44 {dimension_numbers = #tpu.dot_dimension_numbers<[1], [0], [0], [1], [0, 0, 1, 1], [], []>} : vector<24x48xbf16>, vector<48x128xbf16>, vector<24x128xf32> -> vector<24x128xf32>
    %83 = arith.addf %74, %82 : vector<24x128xf32>
    %c0_45 = arith.constant 0 : index
    %c0_46 = arith.constant 0 : index
    %84 = vector.load %arg4[%c0_45, %c0_46] : memref<1x128xf32, #tpu.memory_space<vmem>>, vector<1x128xf32>
    %85 = vector.broadcast %84 : vector<1x128xf32> to vector<24x128xf32>
    %86 = arith.addf %83, %85 : vector<24x128xf32>
    %cst_47 = arith.constant 0.000000e+00 : f32
    %87 = vector.broadcast %cst_47 : f32 to vector<24x128xf32>
    %88 = arith.maximumf %86, %87 : vector<24x128xf32>
    %89 = arith.truncf %88 : vector<24x128xf32> to vector<24x128xbf16>
    %c0_48 = arith.constant 0 : index
    %c0_49 = arith.constant 0 : index
    %90 = vector.load %arg5[%c0_48, %c0_49] : memref<128x128xbf16, #tpu.memory_space<vmem>>, vector<128x128xbf16>
    %cst_50 = arith.constant dense<0.000000e+00> : vector<24x128xf32>
    %91 = tpu.matmul %89, %90, %cst_50 {dimension_numbers = #tpu.dot_dimension_numbers<[1], [0], [0], [1], [0, 0, 1, 1], [], []>} : vector<24x128xbf16>, vector<128x128xbf16>, vector<24x128xf32> -> vector<24x128xf32>
    %c0_51 = arith.constant 0 : index
    %c0_52 = arith.constant 0 : index
    %92 = vector.load %arg6[%c0_51, %c0_52] : memref<1x128xf32, #tpu.memory_space<vmem>>, vector<1x128xf32>
    %93 = vector.broadcast %92 : vector<1x128xf32> to vector<24x128xf32>
    %94 = arith.addf %91, %93 : vector<24x128xf32>
    %cst_53 = arith.constant 0.000000e+00 : f32
    %95 = vector.broadcast %cst_53 : f32 to vector<24x128xf32>
    %96 = arith.maximumf %94, %95 : vector<24x128xf32>
    %97 = arith.truncf %96 : vector<24x128xf32> to vector<24x128xbf16>
    %c0_54 = arith.constant 0 : index
    %c0_55 = arith.constant 0 : index
    %98 = vector.load %arg7[%c0_54, %c0_55] : memref<128x128xbf16, #tpu.memory_space<vmem>>, vector<128x128xbf16>
    %cst_56 = arith.constant dense<0.000000e+00> : vector<24x128xf32>
    %99 = tpu.matmul %97, %98, %cst_56 {dimension_numbers = #tpu.dot_dimension_numbers<[1], [0], [0], [1], [0, 0, 1, 1], [], []>} : vector<24x128xbf16>, vector<128x128xbf16>, vector<24x128xf32> -> vector<24x128xf32>
    %c0_57 = arith.constant 0 : index
    %c0_58 = arith.constant 0 : index
    %100 = vector.load %arg8[%c0_57, %c0_58] : memref<1x128xf32, #tpu.memory_space<vmem>>, vector<1x128xf32>
    %101 = vector.broadcast %100 : vector<1x128xf32> to vector<24x128xf32>
    %102 = arith.addf %99, %101 : vector<24x128xf32>
    %cst_59 = arith.constant 0.000000e+00 : f32
    %103 = vector.broadcast %cst_59 : f32 to vector<24x128xf32>
    %104 = arith.maximumf %102, %103 : vector<24x128xf32>
    %105 = arith.truncf %104 : vector<24x128xf32> to vector<24x128xbf16>
    %c0_60 = arith.constant 0 : index
    %c0_61 = arith.constant 0 : index
    %106 = vector.load %arg9[%c0_60, %c0_61] : memref<128x128xbf16, #tpu.memory_space<vmem>>, vector<128x128xbf16>
    %cst_62 = arith.constant dense<0.000000e+00> : vector<24x128xf32>
    %107 = tpu.matmul %105, %106, %cst_62 {dimension_numbers = #tpu.dot_dimension_numbers<[1], [0], [0], [1], [0, 0, 1, 1], [], []>} : vector<24x128xbf16>, vector<128x128xbf16>, vector<24x128xf32> -> vector<24x128xf32>
    %c0_63 = arith.constant 0 : index
    %c0_64 = arith.constant 0 : index
    %108 = vector.load %arg10[%c0_63, %c0_64] : memref<1x128xf32, #tpu.memory_space<vmem>>, vector<1x128xf32>
    %109 = vector.broadcast %108 : vector<1x128xf32> to vector<24x128xf32>
    %110 = arith.addf %107, %109 : vector<24x128xf32>
    %c0_65 = arith.constant 0 : index
    %c0_66 = arith.constant 0 : index
    %c0_67 = arith.constant 0 : index
    %111 = vector.load %arg11[%c0_65, %c0_66, %c0_67] : memref<1x24x128xf32, #tpu.memory_space<vmem>>, vector<1x24x128xf32>
    %112 = vector.shape_cast %111 : vector<1x24x128xf32> to vector<24x128xf32>
    %113 = vector.shape_cast %110 : vector<24x128xf32> to vector<1x24x128xf32>
    tpu.vector_store %arg11[%c0_65, %c0_66, %c0_67], %113 {strides = array<i32>} : memref<1x24x128xf32, #tpu.memory_space<vmem>>, vector<1x24x128xf32>,
    return
  }
  func.func @transform_0(%arg0: i32, %arg1: i32) -> (i32, i32, i32) {
    %c0_i32 = arith.constant 0 : i32
    %c0_i32_0 = arith.constant 0 : i32
    %c0_i32_1 = arith.constant 0 : i32
    return %arg0, %c0_i32, %c0_i32_0 : i32, i32, i32
  }
  func.func @transform_1(%arg0: i32, %arg1: i32) -> (i32, i32, i32) {
    %c0_i32 = arith.constant 0 : i32
    %c0_i32_0 = arith.constant 0 : i32
    %c0_i32_1 = arith.constant 0 : i32
    %c0_i32_2 = arith.constant 0 : i32
    return %c0_i32, %c0_i32_0, %c0_i32_1 : i32, i32, i32
  }
  func.func @transform_2(%arg0: i32, %arg1: i32) -> (i32, i32) {
    %c0_i32 = arith.constant 0 : i32
    %c0_i32_0 = arith.constant 0 : i32
    %c0_i32_1 = arith.constant 0 : i32
    return %c0_i32, %c0_i32_0 : i32, i32
  }
  func.func @transform_3(%arg0: i32, %arg1: i32) -> (i32, i32) {
    %c0_i32 = arith.constant 0 : i32
    %c0_i32_0 = arith.constant 0 : i32
    %c0_i32_1 = arith.constant 0 : i32
    return %c0_i32, %c0_i32_0 : i32, i32
  }
  func.func @transform_4(%arg0: i32, %arg1: i32) -> (i32, i32) {
    %c0_i32 = arith.constant 0 : i32
    %c0_i32_0 = arith.constant 0 : i32
    %c0_i32_1 = arith.constant 0 : i32
    return %c0_i32, %c0_i32_0 : i32, i32
  }
  func.func @transform_5(%arg0: i32, %arg1: i32) -> (i32, i32) {
    %c0_i32 = arith.constant 0 : i32
    %c0_i32_0 = arith.constant 0 : i32
    %c0_i32_1 = arith.constant 0 : i32
    return %c0_i32, %c0_i32_0 : i32, i32
  }
  func.func @transform_6(%arg0: i32, %arg1: i32) -> (i32, i32) {
    %c0_i32 = arith.constant 0 : i32
    %c0_i32_0 = arith.constant 0 : i32
    %c0_i32_1 = arith.constant 0 : i32
    return %c0_i32, %c0_i32_0 : i32, i32
  }
  func.func @transform_7(%arg0: i32, %arg1: i32) -> (i32, i32) {
    %c0_i32 = arith.constant 0 : i32
    %c0_i32_0 = arith.constant 0 : i32
    %c0_i32_1 = arith.constant 0 : i32
    return %c0_i32, %c0_i32_0 : i32, i32
  }
  func.func @transform_8(%arg0: i32, %arg1: i32) -> (i32, i32) {
    %c0_i32 = arith.constant 0 : i32
    %c0_i32_0 = arith.constant 0 : i32
    %c0_i32_1 = arith.constant 0 : i32
    return %c0_i32, %c0_i32_0 : i32, i32
  }
  func.func @transform_9(%arg0: i32, %arg1: i32) -> (i32, i32, i32) {
    %c0_i32 = arith.constant 0 : i32
    %c0_i32_0 = arith.constant 0 : i32
    return %arg0, %arg1, %c0_i32 : i32, i32, i32
  }
}

</mosaic_0001>

<llo_original>
// kernel: reverse
$region0: #{reverse}
  %s0 = inlined_call_operand.vmem [shape: f32[2,256], index: 0, kind: input, shape index: {}]
  %s1 = inlined_call_operand.vmem [shape: f32[2,256], index: 1, kind: output, shape index: {}]
  %v2 = vlaneseq
  %v3 = vsub.s32 127, %v2
  %4 = vset.pattern.permute.xlu0 %v3
  $region1: #{reverse} parent=0
    #allocation0 [shape = 'u8[4096]{0}', space=vmem, size = 0x1000, scoped, tag = 'operand span for operand 0']
    #allocation1 [shape = 'u8[2048]{0}', space=vmem, size = 0x800, scoped, tag = 'packed  for operand 0']
    #allocation2 [shape = 'u8[4096]{0}', space=vmem, size = 0x1000, scoped, tag = 'operand span for operand 1']
    #allocation3 [shape = 'u8[2048]{0}', space=vmem, size = 0x800, scoped, tag = 'packed  for operand 1']
    loop: start=0, step=1, limit=4
    $region2: #{reverse} parent=1 // loop_pre_header
      _
    $region3: #{reverse} parent=1 // loop_header
      %s6 = sphi 0, %s10
      %p7 = scmp.ge.s32.totalorder %s6, 4
      %s13 = sphi 0, %s25
      %s14 = sphi 0, %s21
      %s15 = sphi 0, %s13
      %s16 = sphi 0, %s14
      %s17 = sphi 0, %s15
      %s18 = sphi 0, %s16
    $region4: #{reverse} parent=1 // loop_header_branch
      %9 = sbr.rel (%p7) target = $region8
    $region5: #{reverse} parent=1 // loop_body
      %s11 = ssub.s32 %s6, 1
      %s12 = ssub.s32 %s6, 2
      %s19 = sadd.s32 1, %s14
      %p20 = scmp.ge.s32.totalorder %s19, 2
      %s21 = scalar_select %p20, 0, %s19
      %s22 = sadd.s32 1, %s13
      %s23 = scalar_select %p20, %s22, %s13
      %p24 = scmp.ge.s32.totalorder %s23, 1
      %s25 = scalar_select %p24, 0, %s23
      %p26 = scmp.le.s32.totalorder 1, %s6
      %p27 = scmp.lt.s32.totalorder %s6, 3
      %p28 = pnand %p26, %p27
      %p29 = pneg %p28
      // Predicated region
      $region9: #{reverse} parent=5 // pred_check
        _
      $region10: #{reverse} parent=5 // pred_check_branch
        %31 = sbr.rel (%p28) target = $region12
      $region11: #{reverse} parent=5 // pred_region
        %s32 = ssub.s32 %s6, 1
      $region12: #{reverse} parent=5 // pred_fallthru
        _
      %p33 = scmp.lt.s32.totalorder %s6, 2
      // Predicated region
      $region13: #{reverse} parent=5 // pred_check
        %p34 = pneg %p33
      $region14: #{reverse} parent=5 // pred_check_branch
        %36 = sbr.rel (%p34) target = $region16
      $region15: #{reverse} parent=5 // pred_region
        %s37 = sand.u32 %s6, 1
        %s38 = sand.u32 %s6, 1
        %s39 = smul.addr %s38, 2
        %s40 = scalar_lea.vmem [#allocation1], %s39
        %s41 = ssub.s32 1, %s14
        %s42 = smul.addr %s13, 2
        %s43 = sadd.s32 %s41, %s42
        %s44 = smul.addr %s43, 2
        %s45 = scalar_lea.vmem %s0, %s44
        // Predicated region
        $region17: #{reverse} parent=15 // pred_check
          _
        $region18: #{reverse} parent=15 // pred_check_branch
          %47 = sbr.rel (0) target = $region20
        $region19: #{reverse} parent=15 // pred_region
          // Predicated region
          $region21: #{reverse} parent=19 // pred_check
            _
          $region22: #{reverse} parent=19 // pred_check_branch
            %49 = sbr.rel target = $region24
          $region23: #{reverse} parent=19 // pred_region
            // Predicated region
            $region36: #{reverse} parent=23 // pred_check
              _
            $region37: #{reverse} parent=23 // pred_check_branch
              %64 = sbr.rel (0) target = $region39
            $region38: #{reverse} parent=23 // pred_region
              loop: start=0, step=1, limit=1
              $region40: #{reverse} parent=38 // loop_pre_header
                _
              $region41: #{reverse} parent=38 // loop_header
                %s67 = sphi 0, %s71
                %p68 = scmp.ge.s32.totalorder %s67, 1
                %s72 = sphi %s45, %s45
                %s73 = sphi %s40, %s40
              $region42: #{reverse} parent=38 // loop_header_branch
                %70 = sbr.rel (%p68) target = $region46
              $region43: #{reverse} parent=38 // loop_body
                %v74 = vld [vmem:[%s72] sm:$0x3]
                %75 = vst [vmem:[%s73] sm:$0x3] %v74
              $region44: #{reverse} parent=38 // loop_footer
                %s71 = sadd.s32 1, %s67
              $region45: #{reverse} parent=38 // loop_footer_branch
                %66 = sbr.rel target = $region41
              $region46: #{reverse} parent=38 // loop_exit
                _
            $region39: #{reverse} parent=23 // pred_fallthru
              _
          $region24: #{reverse} parent=19 // pred_fallthru
            _
          // Predicated region
          $region25: #{reverse} parent=19 // pred_check
            _
          $region26: #{reverse} parent=19 // pred_check_branch
            %51 = sbr.rel (0) target = $region28
          $region27: #{reverse} parent=19 // pred_region
            loop: start=0, step=1, limit=1
            $region29: #{reverse} parent=27 // loop_pre_header
              _
            $region30: #{reverse} parent=27 // loop_header
              %s54 = sphi 0, %s58
              %p55 = scmp.ge.s32.totalorder %s54, 1
              %s59 = sphi %s45, %s45
              %s60 = sphi %s40, %s40
            $region31: #{reverse} parent=27 // loop_header_branch
              %57 = sbr.rel (%p55) target = $region35
            $region32: #{reverse} parent=27 // loop_body
              %v61 = vld [vmem:[%s59] sm:$0x3]
              %62 = vst [vmem:[%s60] sm:$0x3] %v61
            $region33: #{reverse} parent=27 // loop_footer
              %s58 = sadd.s32 1, %s54
            $region34: #{reverse} parent=27 // loop_footer_branch
              %53 = sbr.rel target = $region30
            $region35: #{reverse} parent=27 // loop_exit
              _
          $region28: #{reverse} parent=19 // pred_fallthru
            _
        $region20: #{reverse} parent=15 // pred_fallthru
          _
        %76 = vnop
      $region16: #{reverse} parent=5 // pred_fallthru
        _
      %p77 = scmp.le.s32.totalorder 1, %s6
      %p78 = scmp.lt.s32.totalorder %s6, 3
      %p79 = pnand %p77, %p78
      %p80 = pneg %p79
      // Predicated region
      $region47: #{reverse} parent=5 // pred_check
        _
      $region48: #{reverse} parent=5 // pred_check_branch
        %82 = sbr.rel (%p79) target = $region50
      $region49: #{reverse} parent=5 // pred_region
        %s83 = ssub.s32 %s6, 1
        %s84 = sand.u32 %s11, 1
        %s85 = sand.u32 %s11, 1
        %s86 = smul.addr %s85, 2
        %s87 = scalar_lea.vmem [#allocation1], %s86
        %s88 = sand.u32 %s11, 1
        %s89 = sand.u32 %s11, 1
        %s90 = smul.addr %s89, 2
        %s91 = scalar_lea.vmem [#allocation1], %s90
        %s92 = sand.u32 %s11, 1
        %s93 = sand.u32 %s11, 1
        %s94 = smul.addr %s93, 2
        %s95 = scalar_lea.vmem [#allocation3], %s94
        %s97 = sshllo.u32 0, 2
        %v98 = vld [vmem:[%s91] sm:%s97]
        %99 = vst [vmem:[#allocation0] sm:%s97] %v98
        %s100 = ssub.s32 1, %s16
        %v101 = vld [vmem:[#allocation0] sm:$0xff]
        %102 = vperm.xlu0 %4, %v101
        %v103 = vpop.permute.xlu0 %102
        %104 = vst [vmem:[#allocation2] sm:$0xff] %v103
        %s106 = sshllo.u32 0, 2
        %v108 = vld [vmem:[#allocation2] sm:%s106]
        %s109 = sshllo.u32 0, 2
        %110 = vst [vmem:[%s95] sm:%s109] %v108
        %s111 = sand.u32 %s11, 1
        %s112 = sand.u32 %s11, 1
        %s113 = smul.addr %s112, 2
        %s114 = scalar_lea.vmem [#allocation3], %s113
        %s115 = smul.addr %s15, 2
        %s116 = sadd.s32 %s16, %s115
        %s117 = smul.addr %s116, 2
        %s118 = scalar_lea.vmem %s1, %s117
        // Predicated region
        $region51: #{reverse} parent=49 // pred_check
          _
        $region52: #{reverse} parent=49 // pred_check_branch
          %120 = sbr.rel (0) target = $region54
        $region53: #{reverse} parent=49 // pred_region
          // Predicated region
          $region55: #{reverse} parent=53 // pred_check
            _
          $region56: #{reverse} parent=53 // pred_check_branch
            %122 = sbr.rel target = $region58
          $region57: #{reverse} parent=53 // pred_region
            // Predicated region
            $region70: #{reverse} parent=57 // pred_check
              _
            $region71: #{reverse} parent=57 // pred_check_branch
              %137 = sbr.rel (0) target = $region73
            $region72: #{reverse} parent=57 // pred_region
              loop: start=0, step=1, limit=1
              $region74: #{reverse} parent=72 // loop_pre_header
                _
              $region75: #{reverse} parent=72 // loop_header
                %s140 = sphi 0, %s144
                %p141 = scmp.ge.s32.totalorder %s140, 1
                %s145 = sphi %s114, %s114
                %s146 = sphi %s118, %s118
              $region76: #{reverse} parent=72 // loop_header_branch
                %143 = sbr.rel (%p141) target = $region80
              $region77: #{reverse} parent=72 // loop_body
                %v147 = vld [vmem:[%s145] sm:$0x3]
                %148 = vst [vmem:[%s146] sm:$0x3] %v147
              $region78: #{reverse} parent=72 // loop_footer
                %s144 = sadd.s32 1, %s140
              $region79: #{reverse} parent=72 // loop_footer_branch
                %139 = sbr.rel target = $region75
              $region80: #{reverse} parent=72 // loop_exit
                _
            $region73: #{reverse} parent=57 // pred_fallthru
              _
          $region58: #{reverse} parent=53 // pred_fallthru
            _
          // Predicated region
          $region59: #{reverse} parent=53 // pred_check
            _
          $region60: #{reverse} parent=53 // pred_check_branch
            %124 = sbr.rel (0) target = $region62
          $region61: #{reverse} parent=53 // pred_region
            loop: start=0, step=1, limit=1
            $region63: #{reverse} parent=61 // loop_pre_header
              _
            $region64: #{reverse} parent=61 // loop_header
              %s127 = sphi 0, %s131
              %p128 = scmp.ge.s32.totalorder %s127, 1
              %s132 = sphi %s114, %s114
              %s133 = sphi %s118, %s118
            $region65: #{reverse} parent=61 // loop_header_branch
              %130 = sbr.rel (%p128) target = $region69
            $region66: #{reverse} parent=61 // loop_body
              %v134 = vld [vmem:[%s132] sm:$0x3]
              %135 = vst [vmem:[%s133] sm:$0x3] %v134
            $region67: #{reverse} parent=61 // loop_footer
              %s131 = sadd.s32 1, %s127
            $region68: #{reverse} parent=61 // loop_footer_branch
              %126 = sbr.rel target = $region64
            $region69: #{reverse} parent=61 // loop_exit
              _
          $region62: #{reverse} parent=53 // pred_fallthru
            _
        $region54: #{reverse} parent=49 // pred_fallthru
          _
        %149 = vnop
      $region50: #{reverse} parent=5 // pred_fallthru
        _
      %p150 = scmp.le.s32.totalorder 2, %s6
      // Predicated region
      $region81: #{reverse} parent=5 // pred_check
        %p151 = pneg %p150
      $region82: #{reverse} parent=5 // pred_check_branch
        %153 = sbr.rel (%p151) target = $region84
      $region83: #{reverse} parent=5 // pred_region
        %s154 = ssub.s32 %s6, 2
        %s155 = sand.u32 %s12, 1
        %s156 = sand.u32 %s12, 1
        %s157 = smul.addr %s156, 2
        %s158 = scalar_lea.vmem [#allocation3], %s157
      $region84: #{reverse} parent=5 // pred_fallthru
        _
    $region6: #{reverse} parent=1 // loop_footer
      %s10 = sadd.s32 1, %s6
    $region7: #{reverse} parent=1 // loop_footer_branch
      %5 = sbr.rel target = $region3
    $region8: #{reverse} parent=1 // loop_exit
      _

// kernel: _lambda_.1
$region0: #{_lambda_.1}
  #allocation0 [shape = 'u32[]', space=smem, size = 0x4, offset = 0x4, fixed_abs, tag = 'smem constant byte address 0x4 - core index']
  #allocation1 [shape = 'u32[144,128]{1,0:T(1,128)}', space=vmem, size = 0x12000, scoped, tag = 'internal scratch']
  %s0 = inlined_call_operand.vmem [shape: f32[2,32,48], index: 0, kind: input, shape index: {}]
  %s1 = inlined_call_operand.vmem [shape: bf16[9,48,128], index: 1, kind: input, shape index: {}]
  %s2 = inlined_call_operand.vmem [shape: f32[1,128], index: 2, kind: input, shape index: {}]
  %s3 = inlined_call_operand.vmem [shape: bf16[128,128], index: 3, kind: input, shape index: {}]
  %s4 = inlined_call_operand.vmem [shape: f32[1,128], index: 4, kind: input, shape index: {}]
  %s5 = inlined_call_operand.vmem [shape: bf16[128,128], index: 5, kind: input, shape index: {}]
  %s6 = inlined_call_operand.vmem [shape: f32[1,128], index: 6, kind: input, shape index: {}]
  %s7 = inlined_call_operand.vmem [shape: bf16[128,128], index: 7, kind: input, shape index: {}]
  %s8 = inlined_call_operand.vmem [shape: f32[1,128], index: 8, kind: input, shape index: {}]
  %s9 = inlined_call_operand.vmem [shape: f32[2,17,128], index: 9, kind: output, shape index: {}]
  %s10 = sld [smem:[#allocation0]]
  $region69: #{_lambda_.1} parent=0
    _
  %s12 = ssub.s32 1, %s10
  %s13 = scalar_select 0, %s12, %s10
  loop: start=0, step=1, limit=4
  $region2: #{_lambda_.1} parent=0 // loop_pre_header
    _
  $region3: #{_lambda_.1} parent=0 // loop_header
    %s15 = sphi 0, %s19
    %p16 = scmp.ge.s32.totalorder %s15, 4
    %s22 = sphi 0, %s34
    %s23 = sphi 0, %s30
    %s24 = sphi 0, %s22
    %s25 = sphi 0, %s23
    %s26 = sphi 0, %s24
    %s27 = sphi 0, %s25
    %s37 = sphi 0, %s39
    %s40 = sphi 0, %s37
    %s41 = sphi 0, %s40
    %s57 = sphi 0, %s41
    %s61 = sphi 0, %s61
    %s63 = sphi 0, %s61
    %s64 = sphi 0, %s63
    %s78 = sphi 0, %s64
    %s82 = sphi 0, %s82
    %s84 = sphi 0, %s82
    %s85 = sphi 0, %s84
    %s99 = sphi 0, %s85
    %s103 = sphi 0, %s103
    %s105 = sphi 0, %s103
    %s106 = sphi 0, %s105
    %s120 = sphi 0, %s106
    %s124 = sphi 0, %s124
    %s126 = sphi 0, %s124
    %s127 = sphi 0, %s126
    %s141 = sphi 0, %s127
    %s145 = sphi 0, %s145
    %s147 = sphi 0, %s145
    %s148 = sphi 0, %s147
    %s162 = sphi 0, %s148
    %s166 = sphi 0, %s166
    %s168 = sphi 0, %s166
    %s169 = sphi 0, %s168
    %s183 = sphi 0, %s169
    %s187 = sphi 0, %s187
    %s189 = sphi 0, %s187
    %s190 = sphi 0, %s189
    %s204 = sphi 0, %s190
    %s208 = sphi 0, %s208
    %s210 = sphi 0, %s208
    %s211 = sphi 0, %s210
    %s225 = sphi 0, %s211
    %s233 = sphi 0, %s235
    %s236 = sphi 0, %s233
    %s237 = sphi 0, %s236
    %s253 = sphi 0, %s237
  $region4: #{_lambda_.1} parent=0 // loop_header_branch
    %18 = sbr.rel (%p16) target = $region8
  $region5: #{_lambda_.1} parent=0 // loop_body
    %s20 = ssub.s32 %s15, 1
    %s21 = ssub.s32 %s15, 2
    %s28 = sadd.s32 1, %s23
    %p29 = scmp.ge.s32.totalorder %s28, 1
    %s30 = scalar_select %p29, 0, %s28
    %s31 = sadd.s32 1, %s22
    %s32 = scalar_select %p29, %s31, %s22
    %p33 = scmp.ge.s32.totalorder %s32, 2
    %s34 = scalar_select %p33, 0, %s32
    %s35 = ssub.s32 %s22, %s34
    %p36 = scmp.eq.s32.totalorder %s35, 0
    %s38 = sadd.s32 %s37, 1
    %s39 = scalar_select %p36, %s37, %s38
    %p42 = pneg %p36
    %p43 = scmp.eq.s32.totalorder %s15, 1
    %p44 = por %p42, %p43
    %p45 = scmp.ne.s32.totalorder %s37, %s40
    %p46 = scmp.eq.s32.totalorder %s15, 0
    %p47 = por %p45, %p46
    %p48 = scmp.ne.s32.totalorder %s37, %s40
    %p49 = scmp.eq.s32.totalorder %s20, 1
    %p50 = por %p48, %p49
    %p51 = scmp.ne.s32.totalorder %s40, %s41
    %p52 = scmp.eq.s32.totalorder %s20, 0
    %p53 = por %p51, %p52
    %p54 = scmp.ne.s32.totalorder %s40, %s41
    %p55 = scmp.eq.s32.totalorder %s21, 1
    %p56 = por %p54, %p55
    %p58 = scmp.ne.s32.totalorder %s41, %s57
    %p59 = scmp.eq.s32.totalorder %s21, 0
    %p60 = por %p58, %p59
    %s62 = sadd.s32 %s61, 1
    %p65 = scmp.eq.s32.totalorder %s15, 1
    %p66 = scmp.ne.s32.totalorder %s61, %s63
    %p67 = scmp.eq.s32.totalorder %s15, 0
    %p68 = por %p66, %p67
    %p69 = scmp.ne.s32.totalorder %s61, %s63
    %p70 = scmp.eq.s32.totalorder %s20, 1
    %p71 = por %p69, %p70
    %p72 = scmp.ne.s32.totalorder %s63, %s64
    %p73 = scmp.eq.s32.totalorder %s20, 0
    %p74 = por %p72, %p73
    %p75 = scmp.ne.s32.totalorder %s63, %s64
    %p76 = scmp.eq.s32.totalorder %s21, 1
    %p77 = por %p75, %p76
    %p79 = scmp.ne.s32.totalorder %s64, %s78
    %p80 = scmp.eq.s32.totalorder %s21, 0
    %p81 = por %p79, %p80
    %s83 = sadd.s32 %s82, 1
    %p86 = scmp.eq.s32.totalorder %s15, 1
    %p87 = scmp.ne.s32.totalorder %s82, %s84
    %p88 = scmp.eq.s32.totalorder %s15, 0
    %p89 = por %p87, %p88
    %p90 = scmp.ne.s32.totalorder %s82, %s84
    %p91 = scmp.eq.s32.totalorder %s20, 1
    %p92 = por %p90, %p91
    %p93 = scmp.ne.s32.totalorder %s84, %s85
    %p94 = scmp.eq.s32.totalorder %s20, 0
    %p95 = por %p93, %p94
    %p96 = scmp.ne.s32.totalorder %s84, %s85
    %p97 = scmp.eq.s32.totalorder %s21, 1
    %p98 = por %p96, %p97
    %p100 = scmp.ne.s32.totalorder %s85, %s99
    %p101 = scmp.eq.s32.totalorder %s21, 0
    %p102 = por %p100, %p101
    %s104 = sadd.s32 %s103, 1
    %p107 = scmp.eq.s32.totalorder %s15, 1
    %p108 = scmp.ne.s32.totalorder %s103, %s105
    %p109 = scmp.eq.s32.totalorder %s15, 0
    %p110 = por %p108, %p109
    %p111 = scmp.ne.s32.totalorder %s103, %s105
    %p112 = scmp.eq.s32.totalorder %s20, 1
    %p113 = por %p111, %p112
    %p114 = scmp.ne.s32.totalorder %s105, %s106
    %p115 = scmp.eq.s32.totalorder %s20, 0
    %p116 = por %p114, %p115
    %p117 = scmp.ne.s32.totalorder %s105, %s106
    %p118 = scmp.eq.s32.totalorder %s21, 1
    %p119 = por %p117, %p118
    %p121 = scmp.ne.s32.totalorder %s106, %s120
    %p122 = scmp.eq.s32.totalorder %s21, 0
    %p123 = por %p121, %p122
    %s125 = sadd.s32 %s124, 1
    %p128 = scmp.eq.s32.totalorder %s15, 1
    %p129 = scmp.ne.s32.totalorder %s124, %s126
    %p130 = scmp.eq.s32.totalorder %s15, 0
    %p131 = por %p129, %p130
    %p132 = scmp.ne.s32.totalorder %s124, %s126
    %p133 = scmp.eq.s32.totalorder %s20, 1
    %p134 = por %p132, %p133
    %p135 = scmp.ne.s32.totalorder %s126, %s127
    %p136 = scmp.eq.s32.totalorder %s20, 0
    %p137 = por %p135, %p136
    %p138 = scmp.ne.s32.totalorder %s126, %s127
    %p139 = scmp.eq.s32.totalorder %s21, 1
    %p140 = por %p138, %p139
    %p142 = scmp.ne.s32.totalorder %s127, %s141
    %p143 = scmp.eq.s32.totalorder %s21, 0
    %p144 = por %p142, %p143
    %s146 = sadd.s32 %s145, 1
    %p149 = scmp.eq.s32.totalorder %s15, 1
    %p150 = scmp.ne.s32.totalorder %s145, %s147
    %p151 = scmp.eq.s32.totalorder %s15, 0
    %p152 = por %p150, %p151
    %p153 = scmp.ne.s32.totalorder %s145, %s147
    %p154 = scmp.eq.s32.totalorder %s20, 1
    %p155 = por %p153, %p154
    %p156 = scmp.ne.s32.totalorder %s147, %s148
    %p157 = scmp.eq.s32.totalorder %s20, 0
    %p158 = por %p156, %p157
    %p159 = scmp.ne.s32.totalorder %s147, %s148
    %p160 = scmp.eq.s32.totalorder %s21, 1
    %p161 = por %p159, %p160
    %p163 = scmp.ne.s32.totalorder %s148, %s162
    %p164 = scmp.eq.s32.totalorder %s21, 0
    %p165 = por %p163, %p164
    %s167 = sadd.s32 %s166, 1
    %p170 = scmp.eq.s32.totalorder %s15, 1
    %p171 = scmp.ne.s32.totalorder %s166, %s168
    %p172 = scmp.eq.s32.totalorder %s15, 0
    %p173 = por %p171, %p172
    %p174 = scmp.ne.s32.totalorder %s166, %s168
    %p175 = scmp.eq.s32.totalorder %s20, 1
    %p176 = por %p174, %p175
    %p177 = scmp.ne.s32.totalorder %s168, %s169
    %p178 = scmp.eq.s32.totalorder %s20, 0
    %p179 = por %p177, %p178
    %p180 = scmp.ne.s32.totalorder %s168, %s169
    %p181 = scmp.eq.s32.totalorder %s21, 1
    %p182 = por %p180, %p181
    %p184 = scmp.ne.s32.totalorder %s169, %s183
    %p185 = scmp.eq.s32.totalorder %s21, 0
    %p186 = por %p184, %p185
    %s188 = sadd.s32 %s187, 1
    %p191 = scmp.eq.s32.totalorder %s15, 1
    %p192 = scmp.ne.s32.totalorder %s187, %s189
    %p193 = scmp.eq.s32.totalorder %s15, 0
    %p194 = por %p192, %p193
    %p195 = scmp.ne.s32.totalorder %s187, %s189
    %p196 = scmp.eq.s32.totalorder %s20, 1
    %p197 = por %p195, %p196
    %p198 = scmp.ne.s32.totalorder %s189, %s190
    %p199 = scmp.eq.s32.totalorder %s20, 0
    %p200 = por %p198, %p199
    %p201 = scmp.ne.s32.totalorder %s189, %s190
    %p202 = scmp.eq.s32.totalorder %s21, 1
    %p203 = por %p201, %p202
    %p205 = scmp.ne.s32.totalorder %s190, %s204
    %p206 = scmp.eq.s32.totalorder %s21, 0
    %p207 = por %p205, %p206
    %s209 = sadd.s32 %s208, 1
    %p212 = scmp.eq.s32.totalorder %s15, 1
    %p213 = scmp.ne.s32.totalorder %s208, %s210
    %p214 = scmp.eq.s32.totalorder %s15, 0
    %p215 = por %p213, %p214
    %p216 = scmp.ne.s32.totalorder %s208, %s210
    %p217 = scmp.eq.s32.totalorder %s20, 1
    %p218 = por %p216, %p217
    %p219 = scmp.ne.s32.totalorder %s210, %s211
    %p220 = scmp.eq.s32.totalorder %s20, 0
    %p221 = por %p219, %p220
    %p222 = scmp.ne.s32.totalorder %s210, %s211
    %p223 = scmp.eq.s32.totalorder %s21, 1
    %p224 = por %p222, %p223
    %p226 = scmp.ne.s32.totalorder %s211, %s225
    %p227 = scmp.eq.s32.totalorder %s21, 0
    %p228 = por %p226, %p227
    %s229 = ssub.s32 %s22, %s34
    %s230 = ssub.s32 %s23, %s30
    %s231 = sor.u32 %s229, %s230
    %p232 = scmp.eq.s32.totalorder %s231, 0
    %s234 = sadd.s32 %s233, 1
    %s235 = scalar_select %p232, %s233, %s234
    %p238 = pneg %p232
    %p239 = scmp.eq.s32.totalorder %s15, 1
    %p240 = por %p238, %p239
    %p241 = scmp.ne.s32.totalorder %s233, %s236
    %p242 = scmp.eq.s32.totalorder %s15, 0
    %p243 = por %p241, %p242
    %p244 = scmp.ne.s32.totalorder %s233, %s236
    %p245 = scmp.eq.s32.totalorder %s20, 1
    %p246 = por %p244, %p245
    %p247 = scmp.ne.s32.totalorder %s236, %s237
    %p248 = scmp.eq.s32.totalorder %s20, 0
    %p249 = por %p247, %p248
    %p250 = scmp.ne.s32.totalorder %s236, %s237
    %p251 = scmp.eq.s32.totalorder %s21, 1
    %p252 = por %p250, %p251
    %p254 = scmp.ne.s32.totalorder %s237, %s253
    %p255 = scmp.eq.s32.totalorder %s21, 0
    %p256 = por %p254, %p255
    %p257 = scmp.le.s32.totalorder 1, %s15
    %p258 = scmp.lt.s32.totalorder %s15, 3
    %p259 = pnand %p257, %p258
    %p260 = pneg %p259
    // Predicated region
    $region9: #{_lambda_.1} parent=5 // pred_check
      _
    $region10: #{_lambda_.1} parent=5 // pred_check_branch
      %262 = sbr.rel (%p259) target = $region12
    $region11: #{_lambda_.1} parent=5 // pred_region
      %s263 = ssub.s32 %s15, 1
      // Predicated region
      $region13: #{_lambda_.1} parent=11 // pred_check
        %p264 = pneg %p74
      $region14: #{_lambda_.1} parent=11 // pred_check_branch
        %266 = sbr.rel (%p264) target = $region16
      $region15: #{_lambda_.1} parent=11 // pred_region
        _
      $region16: #{_lambda_.1} parent=11 // pred_fallthru
        _
      // Predicated region
      $region17: #{_lambda_.1} parent=11 // pred_check
        %p267 = pneg %p95
      $region18: #{_lambda_.1} parent=11 // pred_check_branch
        %269 = sbr.rel (%p267) target = $region20
      $region19: #{_lambda_.1} parent=11 // pred_region
        _
      $region20: #{_lambda_.1} parent=11 // pred_fallthru
        _
      // Predicated region
      $region21: #{_lambda_.1} parent=11 // pred_check
        %p270 = pneg %p116
      $region22: #{_lambda_.1} parent=11 // pred_check_branch
        %272 = sbr.rel (%p270) target = $region24
      $region23: #{_lambda_.1} parent=11 // pred_region
        _
      $region24: #{_lambda_.1} parent=11 // pred_fallthru
        _
      // Predicated region
      $region25: #{_lambda_.1} parent=11 // pred_check
        %p273 = pneg %p137
      $region26: #{_lambda_.1} parent=11 // pred_check_branch
        %275 = sbr.rel (%p273) target = $region28
      $region27: #{_lambda_.1} parent=11 // pred_region
        _
      $region28: #{_lambda_.1} parent=11 // pred_fallthru
        _
      // Predicated region
      $region29: #{_lambda_.1} parent=11 // pred_check
        %p276 = pneg %p158
      $region30: #{_lambda_.1} parent=11 // pred_check_branch
        %278 = sbr.rel (%p276) target = $region32
      $region31: #{_lambda_.1} parent=11 // pred_region
        _
      $region32: #{_lambda_.1} parent=11 // pred_fallthru
        _
      // Predicated region
      $region33: #{_lambda_.1} parent=11 // pred_check
        %p279 = pneg %p179
      $region34: #{_lambda_.1} parent=11 // pred_check_branch
        %281 = sbr.rel (%p279) target = $region36
      $region35: #{_lambda_.1} parent=11 // pred_region
        _
      $region36: #{_lambda_.1} parent=11 // pred_fallthru
        _
      // Predicated region
      $region37: #{_lambda_.1} parent=11 // pred_check
        %p282 = pneg %p200
      $region38: #{_lambda_.1} parent=11 // pred_check_branch
        %284 = sbr.rel (%p282) target = $region40
      $region39: #{_lambda_.1} parent=11 // pred_region
        _
      $region40: #{_lambda_.1} parent=11 // pred_fallthru
        _
      // Predicated region
      $region41: #{_lambda_.1} parent=11 // pred_check
        %p285 = pneg %p221
      $region42: #{_lambda_.1} parent=11 // pred_check_branch
        %287 = sbr.rel (%p285) target = $region44
      $region43: #{_lambda_.1} parent=11 // pred_region
        _
      $region44: #{_lambda_.1} parent=11 // pred_fallthru
        _
    $region12: #{_lambda_.1} parent=5 // pred_fallthru
      _
    %p288 = scmp.lt.s32.totalorder %s15, 2
    // Predicated region
    $region45: #{_lambda_.1} parent=5 // pred_check
      %p289 = pneg %p288
    $region46: #{_lambda_.1} parent=5 // pred_check_branch
      %291 = sbr.rel (%p289) target = $region48
    $region47: #{_lambda_.1} parent=5 // pred_region
      // Predicated region
      $region49: #{_lambda_.1} parent=47 // pred_check
        %p292 = pneg %p47
      $region50: #{_lambda_.1} parent=47 // pred_check_branch
        %294 = sbr.rel (%p292) target = $region52
      $region51: #{_lambda_.1} parent=47 // pred_region
        %p295 = scmp.lt.s32.totalorder %s22, 1
        %s296 = scalar_select %p295, %s22, 1
        %s297 = smul.addr %s296, 4
        %s298 = smul.addr %s297, 8
        %s299 = scalar_lea.vmem %s0, %s298
      $region52: #{_lambda_.1} parent=47 // pred_fallthru
        _
    $region48: #{_lambda_.1} parent=5 // pred_fallthru
      _
    %p300 = scmp.le.s32.totalorder 1, %s15
    %p301 = scmp.lt.s32.totalorder %s15, 3
    %p302 = pnand %p300, %p301
    %p303 = pneg %p302
    // Predicated region
    $region53: #{_lambda_.1} parent=5 // pred_check
      _
    $region54: #{_lambda_.1} parent=5 // pred_check_branch
      %305 = sbr.rel (%p302) target = $region56
    $region55: #{_lambda_.1} parent=5 // pred_region
      %s306 = ssub.s32 %s15, 1
      %p307 = scmp.lt.s32.totalorder %s24, 1
      %s308 = scalar_select %p307, %s24, 1
      %s309 = smul.addr %s308, 4
      %s310 = smul.addr %s309, 8
      %s311 = scalar_lea.vmem %s0, %s310
      %p312 = pneg %p53
      %p313 = pneg %p50
      %p314 = pneg %p74
      %p315 = pneg %p71
      %p316 = pneg %p95
      %p317 = pneg %p92
      %p318 = pneg %p116
      %p319 = pneg %p113
      %p320 = pneg %p137
      %p321 = pneg %p134
      %p322 = pneg %p158
      %p323 = pneg %p155
      %p324 = pneg %p179
      %p325 = pneg %p176
      %p326 = pneg %p200
      %p327 = pneg %p197
      %p328 = pneg %p221
      %p329 = pneg %p218
      %p330 = pneg %p249
      %p331 = pneg %p246
      %s332 = smul.u32 3, %s25
      %p333 = scmp.lt.s32.totalorder %s24, 1
      %s334 = scalar_select %p333, %s24, 1
      %p335 = scmp.lt.s32.totalorder %s332, 2
      %s336 = scalar_select %p335, %s332, 2
      %s337 = smul.addr %s334, 3
      %s338 = sadd.s32 %s336, %s337
      %s339 = smul.addr %s338, 8
      %s340 = scalar_lea.vmem %s9, %s339
      %p341 = scmp.lt.s32.totalorder %s24, 1
      %s342 = scalar_select %p341, %s24, 1
      %s343 = smul.addr %s342, 4
      %s344 = smul.addr %s343, 8
      %s345 = scalar_lea.vmem %s0, %s344
      %s346 = smul.u32 3, %s25
      %p347 = scmp.lt.s32.totalorder %s24, 1
      %s348 = scalar_select %p347, %s24, 1
      %p349 = scmp.lt.s32.totalorder %s346, 2
      %s350 = scalar_select %p349, %s346, 2
      %s351 = smul.addr %s348, 3
      %s352 = sadd.s32 %s350, %s351
      %s353 = smul.addr %s352, 8
      %s354 = scalar_lea.vmem %s9, %s353
      %s355 = smul.u32 3, %s25
      %s357 = smul.u32 %s25, 24
      %s358 = scalar_lea.vmem %s345, %s357
      %v359 = vld [vmem:[%s358] sm:$0xff]
      %v360 = vld [vmem:[%s358 + $0x8] sm:$0xff]
      %v361 = vld [vmem:[%s358 + $0x10] sm:$0xff]
      %v362 = vpack.c.bf16 %v360, %v359
      %v363 = vpack.c.bf16 %v361, %v361
      %v364 = vld [vmem:[%s1] sm:$0xf]
      %v365 = vld [vmem:[%s1 + $0x4] sm:$0xf]
      %v366 = vld [vmem:[%s1 + $0x8] sm:$0xf]
      %v367 = vld [vmem:[%s1 + $0xc] sm:$0xf]
      %v368 = vld [vmem:[%s1 + $0x10] sm:$0xf]
      %v369 = vld [vmem:[%s1 + $0x14] sm:$0xf]
      %s370 = sadd.s32 %s357, 1
      %s371 = scalar_lea.vmem %s345, %s370
      %v372 = vld [vmem:[%s371] sm:$0xff]
      %v373 = vld [vmem:[%s371 + $0x8] sm:$0xff]
      %v374 = vld [vmem:[%s371 + $0x10] sm:$0xff]
      %v375 = vpack.c.bf16 %v373, %v372
      %v376 = vpack.c.bf16 %v374, %v374
      %s377 = scalar_lea.vmem %s1, 24
      %v378 = vld [vmem:[%s377] sm:$0xf]
      %v379 = vld [vmem:[%s377 + $0x4] sm:$0xf]
      %v380 = vld [vmem:[%s377 + $0x8] sm:$0xf]
      %v381 = vld [vmem:[%s377 + $0xc] sm:$0xf]
      %v382 = vld [vmem:[%s377 + $0x10] sm:$0xf]
      %v383 = vld [vmem:[%s377 + $0x14] sm:$0xf]
      %v390 = vunpack.c.l.b16 %v378
      %v391 = vunpack.c.l.b16 %v379
      %v392 = vunpack.c.l.b16 %v380
      %v393 = vunpack.c.l.b16 %v381
      %v394 = vunpack.c.l.b16 %v382
      %v395 = vunpack.c.l.b16 %v383
      %v396 = vpack.c.b16 %v391, %v390
      %v397 = vpack.c.b16 %v393, %v392
      %v398 = vpack.c.b16 %v395, %v394
      %vm402 = vcmask 392192
      %v404 = vsel %vm402, %v375, 0
      %v407 = vsel %vm402, %v376, 0
      %409 = vmatprep.subr.bf16.mxu0 0
      %410 = vmatpush1.bf16.msra.mxu0 %v396
      %411 = vmatprep.subr.bf16.mxu0 0
      %412 = vmatpush1.bf16.msra.mxu0 %v397
      %413 = vmatprep.subr.bf16.mxu0 0
      %414 = vmatpush1.bf16.msra.mxu0 %v398
      %415 = vmatprep.subr.bf16.mxu0 0
      %416 = vmatpush1.bf16.msra.mxu0 0
      %417 = vmatprep.subr.bf16.mxu0 0
      %418 = vmatpush1.bf16.msra.mxu0 0
      %419 = vmatprep.subr.bf16.mxu0 0
      %420 = vmatpush1.bf16.msra.mxu0 0
      %421 = vmatprep.subr.bf16.mxu0 0
      %422 = vmatpush1.bf16.msra.mxu0 0
      %423 = vmatprep.subr.bf16.mxu0 0
      %424 = vmatpush1.bf16.msra.mxu0 0
      %425 = vmatprep.subr.bf16.mxu0 0
      %426 = vmatpush1.bf16.msra.mxu0 0
      %427 = vmatprep.subr.bf16.mxu0 0
      %428 = vmatpush1.bf16.msra.mxu0 0
      %429 = vmatprep.subr.bf16.mxu0 0
      %430 = vmatpush1.bf16.msra.mxu0 0
      %431 = vmatprep.subr.bf16.mxu0 0
      %432 = vmatpush1.bf16.msra.mxu0 0
      %433 = vmatprep.subr.bf16.mxu0 0
      %434 = vmatpush1.bf16.msra.mxu0 0
      %435 = vmatprep.subr.bf16.mxu0 0
      %436 = vmatpush1.bf16.msra.mxu0 0
      %437 = vmatprep.subr.bf16.mxu0 0
      %438 = vmatpush1.bf16.msra.mxu0 0
      %439 = vmatprep.subr.bf16.mxu0 0
      %440 = vmatpush1.bf16.msra.mxu0 0
      %441 = vmatprep.mubr.bf16.mxu0 0
      %442 = vmatmul.mubr.bf16.gmra.mrb[0].mxu0 %v404
      %v443 = vpop.f32.mrb[0].mxu0
      %v444 = vadd.f32 0.0, %v443
      %v445 = vpop.f32.mrb[0].mxu0
      %v446 = vpop.f32.mrb[0].mxu0
      %v447 = vadd.f32 0.0, %v446
      %v448 = vpop.f32.mrb[0].mxu0
      %449 = vmatprep.mubr.bf16.mxu0 0
      %450 = vmatmul.mubr.bf16.gmra.mrb[0].mxu0 %v407
      %v451 = vpop.f32.mrb[0].mxu0
      %v452 = vadd.f32 0.0, %v451
      %v453 = vpop.f32.mrb[0].mxu0
      %v454 = vpop.f32.mrb[0].mxu0
      %v455 = vpop.f32.mrb[0].mxu0
      %456 = vdwg.mxu0
      %v463 = vunpack.c.l.b16 %v364
      %v464 = vunpack.c.l.b16 %v365
      %v465 = vunpack.c.l.b16 %v366
      %v466 = vunpack.c.l.b16 %v367
      %v467 = vunpack.c.l.b16 %v368
      %v468 = vunpack.c.l.b16 %v369
      %v469 = vpack.c.b16 %v464, %v463
      %v470 = vpack.c.b16 %v466, %v465
      %v471 = vpack.c.b16 %v468, %v467
      %v476 = vsel %vm402, %v362, 0
      %v479 = vsel %vm402, %v363, 0
      %481 = vmatprep.subr.bf16.mxu0 0
      %482 = vmatpush1.bf16.msra.mxu0 %v469
      %483 = vmatprep.subr.bf16.mxu0 0
      %484 = vmatpush1.bf16.msra.mxu0 %v470
      %485 = vmatprep.subr.bf16.mxu0 0
      %486 = vmatpush1.bf16.msra.mxu0 %v471
      %487 = vmatprep.subr.bf16.mxu0 0
      %488 = vmatpush1.bf16.msra.mxu0 0
      %489 = vmatprep.subr.bf16.mxu0 0
      %490 = vmatpush1.bf16.msra.mxu0 0
      %491 = vmatprep.subr.bf16.mxu0 0
      %492 = vmatpush1.bf16.msra.mxu0 0
      %493 = vmatprep.subr.bf16.mxu0 0
      %494 = vmatpush1.bf16.msra.mxu0 0
      %495 = vmatprep.subr.bf16.mxu0 0
      %496 = vmatpush1.bf16.msra.mxu0 0
      %497 = vmatprep.subr.bf16.mxu0 0
      %498 = vmatpush1.bf16.msra.mxu0 0
      %499 = vmatprep.subr.bf16.mxu0 0
      %500 = vmatpush1.bf16.msra.mxu0 0
      %501 = vmatprep.subr.bf16.mxu0 0
      %502 = vmatpush1.bf16.msra.mxu0 0
      %503 = vmatprep.subr.bf16.mxu0 0
      %504 = vmatpush1.bf16.msra.mxu0 0
      %505 = vmatprep.subr.bf16.mxu0 0
      %506 = vmatpush1.bf16.msra.mxu0 0
      %507 = vmatprep.subr.bf16.mxu0 0
      %508 = vmatpush1.bf16.msra.mxu0 0
      %509 = vmatprep.subr.bf16.mxu0 0
      %510 = vmatpush1.bf16.msra.mxu0 0
      %511 = vmatprep.subr.bf16.mxu0 0
      %512 = vmatpush1.bf16.msra.mxu0 0
      %513 = vmatprep.mubr.bf16.mxu0 0
      %514 = vmatmul.mubr.bf16.gmra.mrb[0].mxu0 %v476
      %v515 = vpop.f32.mrb[0].mxu0
      %v516 = vadd.f32 %v444, %v515
      %v517 = vpop.f32.mrb[0].mxu0
      %v518 = vpop.f32.mrb[0].mxu0
      %v519 = vadd.f32 %v447, %v518
      %v520 = vpop.f32.mrb[0].mxu0
      %521 = vmatprep.mubr.bf16.mxu0 0
      %522 = vmatmul.mubr.bf16.gmra.mrb[0].mxu0 %v479
      %v523 = vpop.f32.mrb[0].mxu0
      %v524 = vadd.f32 %v452, %v523
      %v525 = vpop.f32.mrb[0].mxu0
      %v526 = vpop.f32.mrb[0].mxu0
      %v527 = vpop.f32.mrb[0].mxu0
      %528 = vdwg.mxu0
      %s529 = sadd.s32 %s357, 2
      %s530 = scalar_lea.vmem %s345, %s529
      %v531 = vld [vmem:[%s530] sm:$0xff]
      %v532 = vld [vmem:[%s530 + $0x8] sm:$0xff]
      %v533 = vld [vmem:[%s530 + $0x10] sm:$0xff]
      %v534 = vpack.c.bf16 %v532, %v531
      %v535 = vpack.c.bf16 %v533, %v533
      %s536 = scalar_lea.vmem %s1, 48
      %v537 = vld [vmem:[%s536] sm:$0xf]
      %v538 = vld [vmem:[%s536 + $0x4] sm:$0xf]
      %v539 = vld [vmem:[%s536 + $0x8] sm:$0xf]
      %v540 = vld [vmem:[%s536 + $0xc] sm:$0xf]
      %v541 = vld [vmem:[%s536 + $0x10] sm:$0xf]
      %v542 = vld [vmem:[%s536 + $0x14] sm:$0xf]
      %v549 = vunpack.c.l.b16 %v537
      %v550 = vunpack.c.l.b16 %v538
      %v551 = vunpack.c.l.b16 %v539
      %v552 = vunpack.c.l.b16 %v540
      %v553 = vunpack.c.l.b16 %v541
      %v554 = vunpack.c.l.b16 %v542
      %v555 = vpack.c.b16 %v550, %v549
      %v556 = vpack.c.b16 %v552, %v551
      %v557 = vpack.c.b16 %v554, %v553
      %v562 = vsel %vm402, %v534, 0
      %v565 = vsel %vm402, %v535, 0
      %567 = vmatprep.subr.bf16.mxu0 0
      %568 = vmatpush1.bf16.msra.mxu0 %v555
      %569 = vmatprep.subr.bf16.mxu0 0
      %570 = vmatpush1.bf16.msra.mxu0 %v556
      %571 = vmatprep.subr.bf16.mxu0 0
      %572 = vmatpush1.bf16.msra.mxu0 %v557
      %573 = vmatprep.subr.bf16.mxu0 0
      %574 = vmatpush1.bf16.msra.mxu0 0
      %575 = vmatprep.subr.bf16.mxu0 0
      %576 = vmatpush1.bf16.msra.mxu0 0
      %577 = vmatprep.subr.bf16.mxu0 0
      %578 = vmatpush1.bf16.msra.mxu0 0
      %579 = vmatprep.subr.bf16.mxu0 0
      %580 = vmatpush1.bf16.msra.mxu0 0
      %581 = vmatprep.subr.bf16.mxu0 0
      %582 = vmatpush1.bf16.msra.mxu0 0
      %583 = vmatprep.subr.bf16.mxu0 0
      %584 = vmatpush1.bf16.msra.mxu0 0
      %585 = vmatprep.subr.bf16.mxu0 0
      %586 = vmatpush1.bf16.msra.mxu0 0
      %587 = vmatprep.subr.bf16.mxu0 0
      %588 = vmatpush1.bf16.msra.mxu0 0
      %589 = vmatprep.subr.bf16.mxu0 0
      %590 = vmatpush1.bf16.msra.mxu0 0
      %591 = vmatprep.subr.bf16.mxu0 0
      %592 = vmatpush1.bf16.msra.mxu0 0
      %593 = vmatprep.subr.bf16.mxu0 0
      %594 = vmatpush1.bf16.msra.mxu0 0
      %595 = vmatprep.subr.bf16.mxu0 0
      %596 = vmatpush1.bf16.msra.mxu0 0
      %597 = vmatprep.subr.bf16.mxu0 0
      %598 = vmatpush1.bf16.msra.mxu0 0
      %599 = vmatprep.mubr.bf16.mxu0 0
      %600 = vmatmul.mubr.bf16.gmra.mrb[0].mxu0 %v562
      %v601 = vpop.f32.mrb[0].mxu0
      %v602 = vadd.f32 0.0, %v601
      %v603 = vpop.f32.mrb[0].mxu0
      %v604 = vpop.f32.mrb[0].mxu0
      %v605 = vadd.f32 0.0, %v604
      %v606 = vpop.f32.mrb[0].mxu0
      %607 = vmatprep.mubr.bf16.mxu0 0
      %608 = vmatmul.mubr.bf16.gmra.mrb[0].mxu0 %v565
      %v609 = vpop.f32.mrb[0].mxu0
      %v610 = vadd.f32 0.0, %v609
      %v611 = vpop.f32.mrb[0].mxu0
      %v612 = vpop.f32.mrb[0].mxu0
      %v613 = vpop.f32.mrb[0].mxu0
      %614 = vdwg.mxu0
      %v615 = vadd.f32 %v516, %v602
      %v616 = vadd.f32 %v519, %v605
      %v617 = vadd.f32 %v524, %v610
      %s618 = sadd.s32 %s357, 3
      %s619 = scalar_lea.vmem %s345, %s618
      %v620 = vld [vmem:[%s619] sm:$0xff]
      %v621 = vld [vmem:[%s619 + $0x8] sm:$0xff]
      %v622 = vld [vmem:[%s619 + $0x10] sm:$0xff]
      %v623 = vpack.c.bf16 %v621, %v620
      %v624 = vpack.c.bf16 %v622, %v622
      %s625 = scalar_lea.vmem %s1, 72
      %v626 = vld [vmem:[%s625] sm:$0xf]
      %v627 = vld [vmem:[%s625 + $0x4] sm:$0xf]
      %v628 = vld [vmem:[%s625 + $0x8] sm:$0xf]
      %v629 = vld [vmem:[%s625 + $0xc] sm:$0xf]
      %v630 = vld [vmem:[%s625 + $0x10] sm:$0xf]
      %v631 = vld [vmem:[%s625 + $0x14] sm:$0xf]
      %v638 = vunpack.c.l.b16 %v626
      %v639 = vunpack.c.l.b16 %v627
      %v640 = vunpack.c.l.b16 %v628
      %v641 = vunpack.c.l.b16 %v629
      %v642 = vunpack.c.l.b16 %v630
      %v643 = vunpack.c.l.b16 %v631
      %v644 = vpack.c.b16 %v639, %v638
      %v645 = vpack.c.b16 %v641, %v640
      %v646 = vpack.c.b16 %v643, %v642
      %v651 = vsel %vm402, %v623, 0
      %v654 = vsel %vm402, %v624, 0
      %656 = vmatprep.subr.bf16.mxu0 0
      %657 = vmatpush1.bf16.msra.mxu0 %v644
      %658 = vmatprep.subr.bf16.mxu0 0
      %659 = vmatpush1.bf16.msra.mxu0 %v645
      %660 = vmatprep.subr.bf16.mxu0 0
      %661 = vmatpush1.bf16.msra.mxu0 %v646
      %662 = vmatprep.subr.bf16.mxu0 0
      %663 = vmatpush1.bf16.msra.mxu0 0
      %664 = vmatprep.subr.bf16.mxu0 0
      %665 = vmatpush1.bf16.msra.mxu0 0
      %666 = vmatprep.subr.bf16.mxu0 0
      %667 = vmatpush1.bf16.msra.mxu0 0
      %668 = vmatprep.subr.bf16.mxu0 0
      %669 = vmatpush1.bf16.msra.mxu0 0
      %670 = vmatprep.subr.bf16.mxu0 0
      %671 = vmatpush1.bf16.msra.mxu0 0
      %672 = vmatprep.subr.bf16.mxu0 0
      %673 = vmatpush1.bf16.msra.mxu0 0
      %674 = vmatprep.subr.bf16.mxu0 0
      %675 = vmatpush1.bf16.msra.mxu0 0
      %676 = vmatprep.subr.bf16.mxu0 0
      %677 = vmatpush1.bf16.msra.mxu0 0
      %678 = vmatprep.subr.bf16.mxu0 0
      %679 = vmatpush1.bf16.msra.mxu0 0
      %680 = vmatprep.subr.bf16.mxu0 0
      %681 = vmatpush1.bf16.msra.mxu0 0
      %682 = vmatprep.subr.bf16.mxu0 0
      %683 = vmatpush1.bf16.msra.mxu0 0
      %684 = vmatprep.subr.bf16.mxu0 0
      %685 = vmatpush1.bf16.msra.mxu0 0
      %686 = vmatprep.subr.bf16.mxu0 0
      %687 = vmatpush1.bf16.msra.mxu0 0
      %688 = vmatprep.mubr.bf16.mxu0 0
      %689 = vmatmul.mubr.bf16.gmra.mrb[0].mxu0 %v651
      %v690 = vpop.f32.mrb[0].mxu0
      %v691 = vadd.f32 0.0, %v690
      %v692 = vpop.f32.mrb[0].mxu0
      %v693 = vpop.f32.mrb[0].mxu0
      %v694 = vadd.f32 0.0, %v693
      %v695 = vpop.f32.mrb[0].mxu0
      %696 = vmatprep.mubr.bf16.mxu0 0
      %697 = vmatmul.mubr.bf16.gmra.mrb[0].mxu0 %v654
      %v698 = vpop.f32.mrb[0].mxu0
      %v699 = vadd.f32 0.0, %v698
      %v700 = vpop.f32.mrb[0].mxu0
      %v701 = vpop.f32.mrb[0].mxu0
      %v702 = vpop.f32.mrb[0].mxu0
      %703 = vdwg.mxu0
      %v704 = vadd.f32 %v615, %v691
      %v705 = vadd.f32 %v616, %v694
      %v706 = vadd.f32 %v617, %v699
      %s707 = sadd.s32 %s357, 4
      %s708 = scalar_lea.vmem %s345, %s707
      %v709 = vld [vmem:[%s708] sm:$0xff]
      %v710 = vld [vmem:[%s708 + $0x8] sm:$0xff]
      %v711 = vld [vmem:[%s708 + $0x10] sm:$0xff]
      %v712 = vpack.c.bf16 %v710, %v709
      %v713 = vpack.c.bf16 %v711, %v711
      %s714 = scalar_lea.vmem %s1, 96
      %v715 = vld [vmem:[%s714] sm:$0xf]
      %v716 = vld [vmem:[%s714 + $0x4] sm:$0xf]
      %v717 = vld [vmem:[%s714 + $0x8] sm:$0xf]
      %v718 = vld [vmem:[%s714 + $0xc] sm:$0xf]
      %v719 = vld [vmem:[%s714 + $0x10] sm:$0xf]
      %v720 = vld [vmem:[%s714 + $0x14] sm:$0xf]
      %v727 = vunpack.c.l.b16 %v715
      %v728 = vunpack.c.l.b16 %v716
      %v729 = vunpack.c.l.b16 %v717
      %v730 = vunpack.c.l.b16 %v718
      %v731 = vunpack.c.l.b16 %v719
      %v732 = vunpack.c.l.b16 %v720
      %v733 = vpack.c.b16 %v728, %v727
      %v734 = vpack.c.b16 %v730, %v729
      %v735 = vpack.c.b16 %v732, %v731
      %v740 = vsel %vm402, %v712, 0
      %v743 = vsel %vm402, %v713, 0
      %745 = vmatprep.subr.bf16.mxu0 0
      %746 = vmatpush1.bf16.msra.mxu0 %v733
      %747 = vmatprep.subr.bf16.mxu0 0
      %748 = vmatpush1.bf16.msra.mxu0 %v734
      %749 = vmatprep.subr.bf16.mxu0 0
      %750 = vmatpush1.bf16.msra.mxu0 %v735
      %751 = vmatprep.subr.bf16.mxu0 0
      %752 = vmatpush1.bf16.msra.mxu0 0
      %753 = vmatprep.subr.bf16.mxu0 0
      %754 = vmatpush1.bf16.msra.mxu0 0
      %755 = vmatprep.subr.bf16.mxu0 0
      %756 = vmatpush1.bf16.msra.mxu0 0
      %757 = vmatprep.subr.bf16.mxu0 0
      %758 = vmatpush1.bf16.msra.mxu0 0
      %759 = vmatprep.subr.bf16.mxu0 0
      %760 = vmatpush1.bf16.msra.mxu0 0
      %761 = vmatprep.subr.bf16.mxu0 0
      %762 = vmatpush1.bf16.msra.mxu0 0
      %763 = vmatprep.subr.bf16.mxu0 0
      %764 = vmatpush1.bf16.msra.mxu0 0
      %765 = vmatprep.subr.bf16.mxu0 0
      %766 = vmatpush1.bf16.msra.mxu0 0
      %767 = vmatprep.subr.bf16.mxu0 0
      %768 = vmatpush1.bf16.msra.mxu0 0
      %769 = vmatprep.subr.bf16.mxu0 0
      %770 = vmatpush1.bf16.msra.mxu0 0
      %771 = vmatprep.subr.bf16.mxu0 0
      %772 = vmatpush1.bf16.msra.mxu0 0
      %773 = vmatprep.subr.bf16.mxu0 0
      %774 = vmatpush1.bf16.msra.mxu0 0
      %775 = vmatprep.subr.bf16.mxu0 0
      %776 = vmatpush1.bf16.msra.mxu0 0
      %777 = vmatprep.mubr.bf16.mxu0 0
      %778 = vmatmul.mubr.bf16.gmra.mrb[0].mxu0 %v740
      %v779 = vpop.f32.mrb[0].mxu0
      %v780 = vadd.f32 0.0, %v779
      %v781 = vpop.f32.mrb[0].mxu0
      %v782 = vpop.f32.mrb[0].mxu0
      %v783 = vadd.f32 0.0, %v782
      %v784 = vpop.f32.mrb[0].mxu0
      %785 = vmatprep.mubr.bf16.mxu0 0
      %786 = vmatmul.mubr.bf16.gmra.mrb[0].mxu0 %v743
      %v787 = vpop.f32.mrb[0].mxu0
      %v788 = vadd.f32 0.0, %v787
      %v789 = vpop.f32.mrb[0].mxu0
      %v790 = vpop.f32.mrb[0].mxu0
      %v791 = vpop.f32.mrb[0].mxu0
      %792 = vdwg.mxu0
      %v793 = vadd.f32 %v704, %v780
      %v794 = vadd.f32 %v705, %v783
      %v795 = vadd.f32 %v706, %v788
      %s796 = sadd.s32 %s357, 5
      %s797 = scalar_lea.vmem %s345, %s796
      %v798 = vld [vmem:[%s797] sm:$0xff]
      %v799 = vld [vmem:[%s797 + $0x8] sm:$0xff]
      %v800 = vld [vmem:[%s797 + $0x10] sm:$0xff]
      %v801 = vpack.c.bf16 %v799, %v798
      %v802 = vpack.c.bf16 %v800, %v800
      %s803 = scalar_lea.vmem %s1, 120
      %v804 = vld [vmem:[%s803] sm:$0xf]
      %v805 = vld [vmem:[%s803 + $0x4] sm:$0xf]
      %v806 = vld [vmem:[%s803 + $0x8] sm:$0xf]
      %v807 = vld [vmem:[%s803 + $0xc] sm:$0xf]
      %v808 = vld [vmem:[%s803 + $0x10] sm:$0xf]
      %v809 = vld [vmem:[%s803 + $0x14] sm:$0xf]
      %v816 = vunpack.c.l.b16 %v804
      %v817 = vunpack.c.l.b16 %v805
      %v818 = vunpack.c.l.b16 %v806
      %v819 = vunpack.c.l.b16 %v807
      %v820 = vunpack.c.l.b16 %v808
      %v821 = vunpack.c.l.b16 %v809
      %v822 = vpack.c.b16 %v817, %v816
      %v823 = vpack.c.b16 %v819, %v818
      %v824 = vpack.c.b16 %v821, %v820
      %v829 = vsel %vm402, %v801, 0
      %v832 = vsel %vm402, %v802, 0
      %834 = vmatprep.subr.bf16.mxu0 0
      %835 = vmatpush1.bf16.msra.mxu0 %v822
      %836 = vmatprep.subr.bf16.mxu0 0
      %837 = vmatpush1.bf16.msra.mxu0 %v823
      %838 = vmatprep.subr.bf16.mxu0 0
      %839 = vmatpush1.bf16.msra.mxu0 %v824
      %840 = vmatprep.subr.bf16.mxu0 0
      %841 = vmatpush1.bf16.msra.mxu0 0
      %842 = vmatprep.subr.bf16.mxu0 0
      %843 = vmatpush1.bf16.msra.mxu0 0
      %844 = vmatprep.subr.bf16.mxu0 0
      %845 = vmatpush1.bf16.msra.mxu0 0
      %846 = vmatprep.subr.bf16.mxu0 0
      %847 = vmatpush1.bf16.msra.mxu0 0
      %848 = vmatprep.subr.bf16.mxu0 0
      %849 = vmatpush1.bf16.msra.mxu0 0
      %850 = vmatprep.subr.bf16.mxu0 0
      %851 = vmatpush1.bf16.msra.mxu0 0
      %852 = vmatprep.subr.bf16.mxu0 0
      %853 = vmatpush1.bf16.msra.mxu0 0
      %854 = vmatprep.subr.bf16.mxu0 0
      %855 = vmatpush1.bf16.msra.mxu0 0
      %856 = vmatprep.subr.bf16.mxu0 0
      %857 = vmatpush1.bf16.msra.mxu0 0
      %858 = vmatprep.subr.bf16.mxu0 0
      %859 = vmatpush1.bf16.msra.mxu0 0
      %860 = vmatprep.subr.bf16.mxu0 0
      %861 = vmatpush1.bf16.msra.mxu0 0
      %862 = vmatprep.subr.bf16.mxu0 0
      %863 = vmatpush1.bf16.msra.mxu0 0
      %864 = vmatprep.subr.bf16.mxu0 0
      %865 = vmatpush1.bf16.msra.mxu0 0
      %866 = vmatprep.mubr.bf16.mxu0 0
      %867 = vmatmul.mubr.bf16.gmra.mrb[0].mxu0 %v829
      %v868 = vpop.f32.mrb[0].mxu0
      %v869 = vadd.f32 0.0, %v868
      %v870 = vpop.f32.mrb[0].mxu0
      %v871 = vpop.f32.mrb[0].mxu0
      %v872 = vadd.f32 0.0, %v871
      %v873 = vpop.f32.mrb[0].mxu0
      %874 = vmatprep.mubr.bf16.mxu0 0
      %875 = vmatmul.mubr.bf16.gmra.mrb[0].mxu0 %v832
      %v876 = vpop.f32.mrb[0].mxu0
      %v877 = vadd.f32 0.0, %v876
      %v878 = vpop.f32.mrb[0].mxu0
      %v879 = vpop.f32.mrb[0].mxu0
      %v880 = vpop.f32.mrb[0].mxu0
      %881 = vdwg.mxu0
      %v882 = vadd.f32 %v793, %v869
      %v883 = vadd.f32 %v794, %v872
      %v884 = vadd.f32 %v795, %v877
      %s885 = sadd.s32 %s357, 6
      %s886 = scalar_lea.vmem %s345, %s885
      %v887 = vld [vmem:[%s886] sm:$0xff]
      %v888 = vld [vmem:[%s886 + $0x8] sm:$0xff]
      %v889 = vld [vmem:[%s886 + $0x10] sm:$0xff]
      %v890 = vpack.c.bf16 %v888, %v887
      %v891 = vpack.c.bf16 %v889, %v889
      %s892 = scalar_lea.vmem %s1, 144
      %v893 = vld [vmem:[%s892] sm:$0xf]
      %v894 = vld [vmem:[%s892 + $0x4] sm:$0xf]
      %v895 = vld [vmem:[%s892 + $0x8] sm:$0xf]
      %v896 = vld [vmem:[%s892 + $0xc] sm:$0xf]
      %v897 = vld [vmem:[%s892 + $0x10] sm:$0xf]
      %v898 = vld [vmem:[%s892 + $0x14] sm:$0xf]
      %v905 = vunpack.c.l.b16 %v893
      %v906 = vunpack.c.l.b16 %v894
      %v907 = vunpack.c.l.b16 %v895
      %v908 = vunpack.c.l.b16 %v896
      %v909 = vunpack.c.l.b16 %v897
      %v910 = vunpack.c.l.b16 %v898
      %v911 = vpack.c.b16 %v906, %v905
      %v912 = vpack.c.b16 %v908, %v907
      %v913 = vpack.c.b16 %v910, %v909
      %v918 = vsel %vm402, %v890, 0
      %v921 = vsel %vm402, %v891, 0
      %923 = vmatprep.subr.bf16.mxu0 0
      %924 = vmatpush1.bf16.msra.mxu0 %v911
      %925 = vmatprep.subr.bf16.mxu0 0
      %926 = vmatpush1.bf16.msra.mxu0 %v912
      %927 = vmatprep.subr.bf16.mxu0 0
      %928 = vmatpush1.bf16.msra.mxu0 %v913
      %929 = vmatprep.subr.bf16.mxu0 0
      %930 = vmatpush1.bf16.msra.mxu0 0
      %931 = vmatprep.subr.bf16.mxu0 0
      %932 = vmatpush1.bf16.msra.mxu0 0
      %933 = vmatprep.subr.bf16.mxu0 0
      %934 = vmatpush1.bf16.msra.mxu0 0
      %935 = vmatprep.subr.bf16.mxu0 0
      %936 = vmatpush1.bf16.msra.mxu0 0
      %937 = vmatprep.subr.bf16.mxu0 0
      %938 = vmatpush1.bf16.msra.mxu0 0
      %939 = vmatprep.subr.bf16.mxu0 0
      %940 = vmatpush1.bf16.msra.mxu0 0
      %941 = vmatprep.subr.bf16.mxu0 0
      %942 = vmatpush1.bf16.msra.mxu0 0
      %943 = vmatprep.subr.bf16.mxu0 0
      %944 = vmatpush1.bf16.msra.mxu0 0
      %945 = vmatprep.subr.bf16.mxu0 0
      %946 = vmatpush1.bf16.msra.mxu0 0
      %947 = vmatprep.subr.bf16.mxu0 0
      %948 = vmatpush1.bf16.msra.mxu0 0
      %949 = vmatprep.subr.bf16.mxu0 0
      %950 = vmatpush1.bf16.msra.mxu0 0
      %951 = vmatprep.subr.bf16.mxu0 0
      %952 = vmatpush1.bf16.msra.mxu0 0
      %953 = vmatprep.subr.bf16.mxu0 0
      %954 = vmatpush1.bf16.msra.mxu0 0
      %955 = vmatprep.mubr.bf16.mxu0 0
      %956 = vmatmul.mubr.bf16.gmra.mrb[0].mxu0 %v918
      %v957 = vpop.f32.mrb[0].mxu0
      %v958 = vadd.f32 0.0, %v957
      %v959 = vpop.f32.mrb[0].mxu0
      %v960 = vpop.f32.mrb[0].mxu0
      %v961 = vadd.f32 0.0, %v960
      %v962 = vpop.f32.mrb[0].mxu0
      %963 = vmatprep.mubr.bf16.mxu0 0
      %964 = vmatmul.mubr.bf16.gmra.mrb[0].mxu0 %v921
      %v965 = vpop.f32.mrb[0].mxu0
      %v966 = vadd.f32 0.0, %v965
      %v967 = vpop.f32.mrb[0].mxu0
      %v968 = vpop.f32.mrb[0].mxu0
      %v969 = vpop.f32.mrb[0].mxu0
      %970 = vdwg.mxu0
      %v971 = vadd.f32 %v882, %v958
      %v972 = vadd.f32 %v883, %v961
      %v973 = vadd.f32 %v884, %v966
      %s974 = sadd.s32 %s357, 7
      %s975 = scalar_lea.vmem %s345, %s974
      %v976 = vld [vmem:[%s975] sm:$0xff]
      %v977 = vld [vmem:[%s975 + $0x8] sm:$0xff]
      %v978 = vld [vmem:[%s975 + $0x10] sm:$0xff]
      %v979 = vpack.c.bf16 %v977, %v976
      %v980 = vpack.c.bf16 %v978, %v978
      %s981 = scalar_lea.vmem %s1, 168
      %v982 = vld [vmem:[%s981] sm:$0xf]
      %v983 = vld [vmem:[%s981 + $0x4] sm:$0xf]
      %v984 = vld [vmem:[%s981 + $0x8] sm:$0xf]
      %v985 = vld [vmem:[%s981 + $0xc] sm:$0xf]
      %v986 = vld [vmem:[%s981 + $0x10] sm:$0xf]
      %v987 = vld [vmem:[%s981 + $0x14] sm:$0xf]
      %v994 = vunpack.c.l.b16 %v982
      %v995 = vunpack.c.l.b16 %v983
      %v996 = vunpack.c.l.b16 %v984
      %v997 = vunpack.c.l.b16 %v985
      %v998 = vunpack.c.l.b16 %v986
      %v999 = vunpack.c.l.b16 %v987
      %v1000 = vpack.c.b16 %v995, %v994
      %v1001 = vpack.c.b16 %v997, %v996
      %v1002 = vpack.c.b16 %v999, %v998
      %v1007 = vsel %vm402, %v979, 0
      %v1010 = vsel %vm402, %v980, 0
      %1012 = vmatprep.subr.bf16.mxu0 0
      %1013 = vmatpush1.bf16.msra.mxu0 %v1000
      %1014 = vmatprep.subr.bf16.mxu0 0
      %1015 = vmatpush1.bf16.msra.mxu0 %v1001
      %1016 = vmatprep.subr.bf16.mxu0 0
      %1017 = vmatpush1.bf16.msra.mxu0 %v1002
      %1018 = vmatprep.subr.bf16.mxu0 0
      %1019 = vmatpush1.bf16.msra.mxu0 0
      %1020 = vmatprep.subr.bf16.mxu0 0
      %1021 = vmatpush1.bf16.msra.mxu0 0
      %1022 = vmatprep.subr.bf16.mxu0 0
      %1023 = vmatpush1.bf16.msra.mxu0 0
      %1024 = vmatprep.subr.bf16.mxu0 0
      %1025 = vmatpush1.bf16.msra.mxu0 0
      %1026 = vmatprep.subr.bf16.mxu0 0
      %1027 = vmatpush1.bf16.msra.mxu0 0
      %1028 = vmatprep.subr.bf16.mxu0 0
      %1029 = vmatpush1.bf16.msra.mxu0 0
      %1030 = vmatprep.subr.bf16.mxu0 0
      %1031 = vmatpush1.bf16.msra.mxu0 0
      %1032 = vmatprep.subr.bf16.mxu0 0
      %1033 = vmatpush1.bf16.msra.mxu0 0
      %1034 = vmatprep.subr.bf16.mxu0 0
      %1035 = vmatpush1.bf16.msra.mxu0 0
      %1036 = vmatprep.subr.bf16.mxu0 0
      %1037 = vmatpush1.bf16.msra.mxu0 0
      %1038 = vmatprep.subr.bf16.mxu0 0
      %1039 = vmatpush1.bf16.msra.mxu0 0
      %1040 = vmatprep.subr.bf16.mxu0 0
      %1041 = vmatpush1.bf16.msra.mxu0 0
      %1042 = vmatprep.subr.bf16.mxu0 0
      %1043 = vmatpush1.bf16.msra.mxu0 0
      %1044 = vmatprep.mubr.bf16.mxu0 0
      %1045 = vmatmul.mubr.bf16.gmra.mrb[0].mxu0 %v1007
      %v1046 = vpop.f32.mrb[0].mxu0
      %v1047 = vadd.f32 0.0, %v1046
      %v1048 = vpop.f32.mrb[0].mxu0
      %v1049 = vpop.f32.mrb[0].mxu0
      %v1050 = vadd.f32 0.0, %v1049
      %v1051 = vpop.f32.mrb[0].mxu0
      %1052 = vmatprep.mubr.bf16.mxu0 0
      %1053 = vmatmul.mubr.bf16.gmra.mrb[0].mxu0 %v1010
      %v1054 = vpop.f32.mrb[0].mxu0
      %v1055 = vadd.f32 0.0, %v1054
      %v1056 = vpop.f32.mrb[0].mxu0
      %v1057 = vpop.f32.mrb[0].mxu0
      %v1058 = vpop.f32.mrb[0].mxu0
      %1059 = vdwg.mxu0
      %v1060 = vadd.f32 %v971, %v1047
      %v1061 = vadd.f32 %v972, %v1050
      %v1062 = vadd.f32 %v973, %v1055
      %s1063 = sadd.s32 %s357, 8
      %s1064 = scalar_lea.vmem %s345, %s1063
      %v1065 = vld [vmem:[%s1064] sm:$0xff]
      %v1066 = vld [vmem:[%s1064 + $0x8] sm:$0xff]
      %v1067 = vld [vmem:[%s1064 + $0x10] sm:$0xff]
      %v1068 = vpack.c.bf16 %v1066, %v1065
      %v1069 = vpack.c.bf16 %v1067, %v1067
      %s1070 = scalar_lea.vmem %s1, 192
      %v1071 = vld [vmem:[%s1070] sm:$0xf]
      %v1072 = vld [vmem:[%s1070 + $0x4] sm:$0xf]
      %v1073 = vld [vmem:[%s1070 + $0x8] sm:$0xf]
      %v1074 = vld [vmem:[%s1070 + $0xc] sm:$0xf]
      %v1075 = vld [vmem:[%s1070 + $0x10] sm:$0xf]
      %v1076 = vld [vmem:[%s1070 + $0x14] sm:$0xf]
      %v1083 = vunpack.c.l.b16 %v1071
      %v1084 = vunpack.c.l.b16 %v1072
      %v1085 = vunpack.c.l.b16 %v1073
      %v1086 = vunpack.c.l.b16 %v1074
      %v1087 = vunpack.c.l.b16 %v1075
      %v1088 = vunpack.c.l.b16 %v1076
      %v1089 = vpack.c.b16 %v1084, %v1083
      %v1090 = vpack.c.b16 %v1086, %v1085
      %v1091 = vpack.c.b16 %v1088, %v1087
      %v1096 = vsel %vm402, %v1068, 0
      %v1099 = vsel %vm402, %v1069, 0
      %1101 = vmatprep.subr.bf16.mxu0 0
      %1102 = vmatpush1.bf16.msra.mxu0 %v1089
      %1103 = vmatprep.subr.bf16.mxu0 0
      %1104 = vmatpush1.bf16.msra.mxu0 %v1090
      %1105 = vmatprep.subr.bf16.mxu0 0
      %1106 = vmatpush1.bf16.msra.mxu0 %v1091
      %1107 = vmatprep.subr.bf16.mxu0 0
      %1108 = vmatpush1.bf16.msra.mxu0 0
      %1109 = vmatprep.subr.bf16.mxu0 0
      %1110 = vmatpush1.bf16.msra.mxu0 0
      %1111 = vmatprep.subr.bf16.mxu0 0
      %1112 = vmatpush1.bf16.msra.mxu0 0
      %1113 = vmatprep.subr.bf16.mxu0 0
      %1114 = vmatpush1.bf16.msra.mxu0 0
      %1115 = vmatprep.subr.bf16.mxu0 0
      %1116 = vmatpush1.bf16.msra.mxu0 0
      %1117 = vmatprep.subr.bf16.mxu0 0
      %1118 = vmatpush1.bf16.msra.mxu0 0
      %1119 = vmatprep.subr.bf16.mxu0 0
      %1120 = vmatpush1.bf16.msra.mxu0 0
      %1121 = vmatprep.subr.bf16.mxu0 0
      %1122 = vmatpush1.bf16.msra.mxu0 0
      %1123 = vmatprep.subr.bf16.mxu0 0
      %1124 = vmatpush1.bf16.msra.mxu0 0
      %1125 = vmatprep.subr.bf16.mxu0 0
      %1126 = vmatpush1.bf16.msra.mxu0 0
      %1127 = vmatprep.subr.bf16.mxu0 0
      %1128 = vmatpush1.bf16.msra.mxu0 0
      %1129 = vmatprep.subr.bf16.mxu0 0
      %1130 = vmatpush1.bf16.msra.mxu0 0
      %1131 = vmatprep.subr.bf16.mxu0 0
      %1132 = vmatpush1.bf16.msra.mxu0 0
      %1133 = vmatprep.mubr.bf16.mxu0 0
      %1134 = vmatmul.mubr.bf16.gmra.mrb[0].mxu0 %v1096
      %v1135 = vpop.f32.mrb[0].mxu0
      %v1136 = vadd.f32 0.0, %v1135
      %v1137 = vpop.f32.mrb[0].mxu0
      %v1138 = vpop.f32.mrb[0].mxu0
      %v1139 = vadd.f32 0.0, %v1138
      %v1140 = vpop.f32.mrb[0].mxu0
      %1141 = vmatprep.mubr.bf16.mxu0 0
      %1142 = vmatmul.mubr.bf16.gmra.mrb[0].mxu0 %v1099
      %v1143 = vpop.f32.mrb[0].mxu0
      %v1144 = vadd.f32 0.0, %v1143
      %v1145 = vpop.f32.mrb[0].mxu0
      %v1146 = vpop.f32.mrb[0].mxu0
      %v1147 = vpop.f32.mrb[0].mxu0
      %1148 = vdwg.mxu0
      %v1149 = vadd.f32 %v1060, %v1136
      %v1150 = vadd.f32 %v1061, %v1139
      %v1151 = vadd.f32 %v1062, %v1144
      %v1152 = vld [vmem:[%s2] sm:$0x1]
      %v1154 = vlaneseq
      %v1155 = vshrl.u32 %v1154, 7
      %v1156 = vsub.s32 0, %v1155
      %v1157 = vrot.slane %v1152, %v1156
      %v1159 = vadd.f32 %v1149, %v1157
      %v1160 = vadd.f32 %v1150, %v1157
      %v1161 = vadd.f32 %v1151, %v1157
      %v1162 = vmax.f32 %v1159, 0.0
      %v1163 = vmax.f32 %v1160, 0.0
      %v1164 = vmax.f32 %v1161, 0.0
      %v1165 = vpack.c.bf16 %v1163, %v1162
      %v1166 = vpack.c.bf16 %v1164, %v1164
      %v1167 = vld [vmem:[%s3] sm:$0xf]
      %v1168 = vld [vmem:[%s3 + $0x4] sm:$0xf]
      %v1169 = vld [vmem:[%s3 + $0x8] sm:$0xf]
      %v1170 = vld [vmem:[%s3 + $0xc] sm:$0xf]
      %v1171 = vld [vmem:[%s3 + $0x10] sm:$0xf]
      %v1172 = vld [vmem:[%s3 + $0x14] sm:$0xf]
      %v1173 = vld [vmem:[%s3 + $0x18] sm:$0xf]
      %v1174 = vld [vmem:[%s3 + $0x1c] sm:$0xf]
      %v1175 = vld [vmem:[%s3 + $0x20] sm:$0xf]
      %v1176 = vld [vmem:[%s3 + $0x24] sm:$0xf]
      %v1177 = vld [vmem:[%s3 + $0x28] sm:$0xf]
      %v1178 = vld [vmem:[%s3 + $0x2c] sm:$0xf]
      %v1179 = vld [vmem:[%s3 + $0x30] sm:$0xf]
      %v1180 = vld [vmem:[%s3 + $0x34] sm:$0xf]
      %v1181 = vld [vmem:[%s3 + $0x38] sm:$0xf]
      %v1182 = vld [vmem:[%s3 + $0x3c] sm:$0xf]
      %v1183 = vld [vmem:[%s4] sm:$0x1]
      %v1185 = vlaneseq
      %v1186 = vshrl.u32 %v1185, 7
      %v1187 = vsub.s32 0, %v1186
      %v1188 = vrot.slane %v1183, %v1187
      %v1206 = vunpack.c.l.b16 %v1167
      %v1207 = vunpack.c.l.b16 %v1168
      %v1208 = vunpack.c.l.b16 %v1169
      %v1209 = vunpack.c.l.b16 %v1170
      %v1210 = vunpack.c.l.b16 %v1171
      %v1211 = vunpack.c.l.b16 %v1172
      %v1212 = vunpack.c.l.b16 %v1173
      %v1213 = vunpack.c.l.b16 %v1174
      %v1214 = vunpack.c.l.b16 %v1175
      %v1215 = vunpack.c.l.b16 %v1176
      %v1216 = vunpack.c.l.b16 %v1177
      %v1217 = vunpack.c.l.b16 %v1178
      %v1218 = vunpack.c.l.b16 %v1179
      %v1219 = vunpack.c.l.b16 %v1180
      %v1220 = vunpack.c.l.b16 %v1181
      %v1221 = vunpack.c.l.b16 %v1182
      %v1222 = vpack.c.b16 %v1207, %v1206
      %v1223 = vpack.c.b16 %v1209, %v1208
      %v1224 = vpack.c.b16 %v1211, %v1210
      %v1225 = vpack.c.b16 %v1213, %v1212
      %v1226 = vpack.c.b16 %v1215, %v1214
      %v1227 = vpack.c.b16 %v1217, %v1216
      %v1228 = vpack.c.b16 %v1219, %v1218
      %v1229 = vpack.c.b16 %v1221, %v1220
      %1238 = vmatprep.subr.bf16.mxu0 0
      %1239 = vmatpush1.bf16.msra.mxu0 %v1222
      %1240 = vmatprep.subr.bf16.mxu0 0
      %1241 = vmatpush1.bf16.msra.mxu0 %v1223
      %1242 = vmatprep.subr.bf16.mxu0 0
      %1243 = vmatpush1.bf16.msra.mxu0 %v1224
      %1244 = vmatprep.subr.bf16.mxu0 0
      %1245 = vmatpush1.bf16.msra.mxu0 %v1225
      %1246 = vmatprep.subr.bf16.mxu0 0
      %1247 = vmatpush1.bf16.msra.mxu0 %v1226
      %1248 = vmatprep.subr.bf16.mxu0 0
      %1249 = vmatpush1.bf16.msra.mxu0 %v1227
      %1250 = vmatprep.subr.bf16.mxu0 0
      %1251 = vmatpush1.bf16.msra.mxu0 %v1228
      %1252 = vmatprep.subr.bf16.mxu0 0
      %1253 = vmatpush1.bf16.msra.mxu0 %v1229
      %1254 = vmatprep.subr.bf16.mxu0 0
      %1255 = vmatpush1.bf16.msra.mxu0 0
      %1256 = vmatprep.subr.bf16.mxu0 0
      %1257 = vmatpush1.bf16.msra.mxu0 0
      %1258 = vmatprep.subr.bf16.mxu0 0
      %1259 = vmatpush1.bf16.msra.mxu0 0
      %1260 = vmatprep.subr.bf16.mxu0 0
      %1261 = vmatpush1.bf16.msra.mxu0 0
      %1262 = vmatprep.subr.bf16.mxu0 0
      %1263 = vmatpush1.bf16.msra.mxu0 0
      %1264 = vmatprep.subr.bf16.mxu0 0
      %1265 = vmatpush1.bf16.msra.mxu0 0
      %1266 = vmatprep.subr.bf16.mxu0 0
      %1267 = vmatpush1.bf16.msra.mxu0 0
      %1268 = vmatprep.subr.bf16.mxu0 0
      %1269 = vmatpush1.bf16.msra.mxu0 0
      %1270 = vmatprep.mubr.bf16.mxu0 0
      %1271 = vmatmul.mubr.bf16.gmra.mrb[0].mxu0 %v1165
      %v1272 = vpop.f32.mrb[0].mxu0
      %v1273 = vadd.f32 %v1188, %v1272
      %v1274 = vpop.f32.mrb[0].mxu0
      %v1275 = vpop.f32.mrb[0].mxu0
      %v1276 = vadd.f32 %v1188, %v1275
      %v1277 = vpop.f32.mrb[0].mxu0
      %1278 = vmatprep.mubr.bf16.mxu0 0
      %1279 = vmatmul.mubr.bf16.gmra.mrb[0].mxu0 %v1166
      %v1280 = vpop.f32.mrb[0].mxu0
      %v1281 = vadd.f32 %v1188, %v1280
      %v1282 = vpop.f32.mrb[0].mxu0
      %v1283 = vpop.f32.mrb[0].mxu0
      %v1284 = vpop.f32.mrb[0].mxu0
      %1285 = vdwg.mxu0
      %v1286 = vmax.f32 %v1273, 0.0
      %v1287 = vmax.f32 %v1276, 0.0
      %v1288 = vmax.f32 %v1281, 0.0
      %v1289 = vpack.c.bf16 %v1287, %v1286
      %v1290 = vpack.c.bf16 %v1288, %v1288
      %v1291 = vld [vmem:[%s5] sm:$0xf]
      %v1292 = vld [vmem:[%s5 + $0x4] sm:$0xf]
      %v1293 = vld [vmem:[%s5 + $0x8] sm:$0xf]
      %v1294 = vld [vmem:[%s5 + $0xc] sm:$0xf]
      %v1295 = vld [vmem:[%s5 + $0x10] sm:$0xf]
      %v1296 = vld [vmem:[%s5 + $0x14] sm:$0xf]
      %v1297 = vld [vmem:[%s5 + $0x18] sm:$0xf]
      %v1298 = vld [vmem:[%s5 + $0x1c] sm:$0xf]
      %v1299 = vld [vmem:[%s5 + $0x20] sm:$0xf]
      %v1300 = vld [vmem:[%s5 + $0x24] sm:$0xf]
      %v1301 = vld [vmem:[%s5 + $0x28] sm:$0xf]
      %v1302 = vld [vmem:[%s5 + $0x2c] sm:$0xf]
      %v1303 = vld [vmem:[%s5 + $0x30] sm:$0xf]
      %v1304 = vld [vmem:[%s5 + $0x34] sm:$0xf]
      %v1305 = vld [vmem:[%s5 + $0x38] sm:$0xf]
      %v1306 = vld [vmem:[%s5 + $0x3c] sm:$0xf]
      %v1307 = vld [vmem:[%s6] sm:$0x1]
      %v1309 = vlaneseq
      %v1310 = vshrl.u32 %v1309, 7
      %v1311 = vsub.s32 0, %v1310
      %v1312 = vrot.slane %v1307, %v1311
      %v1330 = vunpack.c.l.b16 %v1291
      %v1331 = vunpack.c.l.b16 %v1292
      %v1332 = vunpack.c.l.b16 %v1293
      %v1333 = vunpack.c.l.b16 %v1294
      %v1334 = vunpack.c.l.b16 %v1295
      %v1335 = vunpack.c.l.b16 %v1296
      %v1336 = vunpack.c.l.b16 %v1297
      %v1337 = vunpack.c.l.b16 %v1298
      %v1338 = vunpack.c.l.b16 %v1299
      %v1339 = vunpack.c.l.b16 %v1300
      %v1340 = vunpack.c.l.b16 %v1301
      %v1341 = vunpack.c.l.b16 %v1302
      %v1342 = vunpack.c.l.b16 %v1303
      %v1343 = vunpack.c.l.b16 %v1304
      %v1344 = vunpack.c.l.b16 %v1305
      %v1345 = vunpack.c.l.b16 %v1306
      %v1346 = vpack.c.b16 %v1331, %v1330
      %v1347 = vpack.c.b16 %v1333, %v1332
      %v1348 = vpack.c.b16 %v1335, %v1334
      %v1349 = vpack.c.b16 %v1337, %v1336
      %v1350 = vpack.c.b16 %v1339, %v1338
      %v1351 = vpack.c.b16 %v1341, %v1340
      %v1352 = vpack.c.b16 %v1343, %v1342
      %v1353 = vpack.c.b16 %v1345, %v1344
      %1362 = vmatprep.subr.bf16.mxu0 0
      %1363 = vmatpush1.bf16.msra.mxu0 %v1346
      %1364 = vmatprep.subr.bf16.mxu0 0
      %1365 = vmatpush1.bf16.msra.mxu0 %v1347
      %1366 = vmatprep.subr.bf16.mxu0 0
      %1367 = vmatpush1.bf16.msra.mxu0 %v1348
      %1368 = vmatprep.subr.bf16.mxu0 0
      %1369 = vmatpush1.bf16.msra.mxu0 %v1349
      %1370 = vmatprep.subr.bf16.mxu0 0
      %1371 = vmatpush1.bf16.msra.mxu0 %v1350
      %1372 = vmatprep.subr.bf16.mxu0 0
      %1373 = vmatpush1.bf16.msra.mxu0 %v1351
      %1374 = vmatprep.subr.bf16.mxu0 0
      %1375 = vmatpush1.bf16.msra.mxu0 %v1352
      %1376 = vmatprep.subr.bf16.mxu0 0
      %1377 = vmatpush1.bf16.msra.mxu0 %v1353
      %1378 = vmatprep.subr.bf16.mxu0 0
      %1379 = vmatpush1.bf16.msra.mxu0 0
      %1380 = vmatprep.subr.bf16.mxu0 0
      %1381 = vmatpush1.bf16.msra.mxu0 0
      %1382 = vmatprep.subr.bf16.mxu0 0
      %1383 = vmatpush1.bf16.msra.mxu0 0
      %1384 = vmatprep.subr.bf16.mxu0 0
      %1385 = vmatpush1.bf16.msra.mxu0 0
      %1386 = vmatprep.subr.bf16.mxu0 0
      %1387 = vmatpush1.bf16.msra.mxu0 0
      %1388 = vmatprep.subr.bf16.mxu0 0
      %1389 = vmatpush1.bf16.msra.mxu0 0
      %1390 = vmatprep.subr.bf16.mxu0 0
      %1391 = vmatpush1.bf16.msra.mxu0 0
      %1392 = vmatprep.subr.bf16.mxu0 0
      %1393 = vmatpush1.bf16.msra.mxu0 0
      %1394 = vmatprep.mubr.bf16.mxu0 0
      %1395 = vmatmul.mubr.bf16.gmra.mrb[0].mxu0 %v1289
      %v1396 = vpop.f32.mrb[0].mxu0
      %v1397 = vadd.f32 %v1312, %v1396
      %v1398 = vpop.f32.mrb[0].mxu0
      %v1399 = vpop.f32.mrb[0].mxu0
      %v1400 = vadd.f32 %v1312, %v1399
      %v1401 = vpop.f32.mrb[0].mxu0
      %1402 = vmatprep.mubr.bf16.mxu0 0
      %1403 = vmatmul.mubr.bf16.gmra.mrb[0].mxu0 %v1290
      %v1404 = vpop.f32.mrb[0].mxu0
      %v1405 = vadd.f32 %v1312, %v1404
      %v1406 = vpop.f32.mrb[0].mxu0
      %v1407 = vpop.f32.mrb[0].mxu0
      %v1408 = vpop.f32.mrb[0].mxu0
      %1409 = vdwg.mxu0
      %v1410 = vmax.f32 %v1397, 0.0
      %v1411 = vmax.f32 %v1400, 0.0
      %v1412 = vmax.f32 %v1405, 0.0
      %v1413 = vpack.c.bf16 %v1411, %v1410
      %v1414 = vpack.c.bf16 %v1412, %v1412
      %v1415 = vld [vmem:[%s7] sm:$0xf]
      %v1416 = vld [vmem:[%s7 + $0x4] sm:$0xf]
      %v1417 = vld [vmem:[%s7 + $0x8] sm:$0xf]
      %v1418 = vld [vmem:[%s7 + $0xc] sm:$0xf]
      %v1419 = vld [vmem:[%s7 + $0x10] sm:$0xf]
      %v1420 = vld [vmem:[%s7 + $0x14] sm:$0xf]
      %v1421 = vld [vmem:[%s7 + $0x18] sm:$0xf]
      %v1422 = vld [vmem:[%s7 + $0x1c] sm:$0xf]
      %v1423 = vld [vmem:[%s7 + $0x20] sm:$0xf]
      %v1424 = vld [vmem:[%s7 + $0x24] sm:$0xf]
      %v1425 = vld [vmem:[%s7 + $0x28] sm:$0xf]
      %v1426 = vld [vmem:[%s7 + $0x2c] sm:$0xf]
      %v1427 = vld [vmem:[%s7 + $0x30] sm:$0xf]
      %v1428 = vld [vmem:[%s7 + $0x34] sm:$0xf]
      %v1429 = vld [vmem:[%s7 + $0x38] sm:$0xf]
      %v1430 = vld [vmem:[%s7 + $0x3c] sm:$0xf]
      %v1431 = vld [vmem:[%s8] sm:$0x1]
      %v1433 = vlaneseq
      %v1434 = vshrl.u32 %v1433, 7
      %v1435 = vsub.s32 0, %v1434
      %v1436 = vrot.slane %v1431, %v1435
      %v1454 = vunpack.c.l.b16 %v1415
      %v1455 = vunpack.c.l.b16 %v1416
      %v1456 = vunpack.c.l.b16 %v1417
      %v1457 = vunpack.c.l.b16 %v1418
      %v1458 = vunpack.c.l.b16 %v1419
      %v1459 = vunpack.c.l.b16 %v1420
      %v1460 = vunpack.c.l.b16 %v1421
      %v1461 = vunpack.c.l.b16 %v1422
      %v1462 = vunpack.c.l.b16 %v1423
      %v1463 = vunpack.c.l.b16 %v1424
      %v1464 = vunpack.c.l.b16 %v1425
      %v1465 = vunpack.c.l.b16 %v1426
      %v1466 = vunpack.c.l.b16 %v1427
      %v1467 = vunpack.c.l.b16 %v1428
      %v1468 = vunpack.c.l.b16 %v1429
      %v1469 = vunpack.c.l.b16 %v1430
      %v1470 = vpack.c.b16 %v1455, %v1454
      %v1471 = vpack.c.b16 %v1457, %v1456
      %v1472 = vpack.c.b16 %v1459, %v1458
      %v1473 = vpack.c.b16 %v1461, %v1460
      %v1474 = vpack.c.b16 %v1463, %v1462
      %v1475 = vpack.c.b16 %v1465, %v1464
      %v1476 = vpack.c.b16 %v1467, %v1466
      %v1477 = vpack.c.b16 %v1469, %v1468
      %1486 = vmatprep.subr.bf16.mxu0 0
      %1487 = vmatpush1.bf16.msra.mxu0 %v1470
      %1488 = vmatprep.subr.bf16.mxu0 0
      %1489 = vmatpush1.bf16.msra.mxu0 %v1471
      %1490 = vmatprep.subr.bf16.mxu0 0
      %1491 = vmatpush1.bf16.msra.mxu0 %v1472
      %1492 = vmatprep.subr.bf16.mxu0 0
      %1493 = vmatpush1.bf16.msra.mxu0 %v1473
      %1494 = vmatprep.subr.bf16.mxu0 0
      %1495 = vmatpush1.bf16.msra.mxu0 %v1474
      %1496 = vmatprep.subr.bf16.mxu0 0
      %1497 = vmatpush1.bf16.msra.mxu0 %v1475
      %1498 = vmatprep.subr.bf16.mxu0 0
      %1499 = vmatpush1.bf16.msra.mxu0 %v1476
      %1500 = vmatprep.subr.bf16.mxu0 0
      %1501 = vmatpush1.bf16.msra.mxu0 %v1477
      %1502 = vmatprep.subr.bf16.mxu0 0
      %1503 = vmatpush1.bf16.msra.mxu0 0
      %1504 = vmatprep.subr.bf16.mxu0 0
      %1505 = vmatpush1.bf16.msra.mxu0 0
      %1506 = vmatprep.subr.bf16.mxu0 0
      %1507 = vmatpush1.bf16.msra.mxu0 0
      %1508 = vmatprep.subr.bf16.mxu0 0
      %1509 = vmatpush1.bf16.msra.mxu0 0
      %1510 = vmatprep.subr.bf16.mxu0 0
      %1511 = vmatpush1.bf16.msra.mxu0 0
      %1512 = vmatprep.subr.bf16.mxu0 0
      %1513 = vmatpush1.bf16.msra.mxu0 0
      %1514 = vmatprep.subr.bf16.mxu0 0
      %1515 = vmatpush1.bf16.msra.mxu0 0
      %1516 = vmatprep.subr.bf16.mxu0 0
      %1517 = vmatpush1.bf16.msra.mxu0 0
      %1518 = vmatprep.mubr.bf16.mxu0 0
      %1519 = vmatmul.mubr.bf16.gmra.mrb[0].mxu0 %v1413
      %v1520 = vpop.f32.mrb[0].mxu0
      %v1521 = vadd.f32 %v1436, %v1520
      %v1522 = vpop.f32.mrb[0].mxu0
      %v1523 = vpop.f32.mrb[0].mxu0
      %v1524 = vadd.f32 %v1436, %v1523
      %v1525 = vpop.f32.mrb[0].mxu0
      %1526 = vmatprep.mubr.bf16.mxu0 0
      %1527 = vmatmul.mubr.bf16.gmra.mrb[0].mxu0 %v1414
      %v1528 = vpop.f32.mrb[0].mxu0
      %v1529 = vadd.f32 %v1436, %v1528
      %v1530 = vpop.f32.mrb[0].mxu0
      %v1531 = vpop.f32.mrb[0].mxu0
      %v1532 = vpop.f32.mrb[0].mxu0
      %1533 = vdwg.mxu0
      %1534 = vst [vmem:[%s354] sm:$0xff] %v1521
      %1535 = vst [vmem:[%s354 + $0x8] sm:$0xff] %v1524
      %1536 = vst [vmem:[%s354 + $0x10] sm:$0xff] %v1529
      %s1537 = smul.u32 3, %s25
      %p1538 = scmp.lt.s32.totalorder %s24, 1
      %s1539 = scalar_select %p1538, %s24, 1
      %p1540 = scmp.lt.s32.totalorder %s1537, 2
      %s1541 = scalar_select %p1540, %s1537, 2
      %s1542 = smul.addr %s1539, 3
      %s1543 = sadd.s32 %s1541, %s1542
      %s1544 = smul.addr %s1543, 8
      %s1545 = scalar_lea.vmem %s9, %s1544
      // Predicated region
      $region57: #{_lambda_.1} parent=55 // pred_check
        %p1546 = pneg %p246
      $region58: #{_lambda_.1} parent=55 // pred_check_branch
        %1548 = sbr.rel (%p1546) target = $region60
      $region59: #{_lambda_.1} parent=55 // pred_region
        %s1549 = smul.u32 3, %s25
      $region60: #{_lambda_.1} parent=55 // pred_fallthru
        _
    $region56: #{_lambda_.1} parent=5 // pred_fallthru
      _
    %p1550 = scmp.le.s32.totalorder 2, %s15
    // Predicated region
    $region61: #{_lambda_.1} parent=5 // pred_check
      %p1551 = pneg %p1550
    $region62: #{_lambda_.1} parent=5 // pred_check_branch
      %1553 = sbr.rel (%p1551) target = $region64
    $region63: #{_lambda_.1} parent=5 // pred_region
      %s1554 = ssub.s32 %s15, 2
      // Predicated region
      $region65: #{_lambda_.1} parent=63 // pred_check
        %p1555 = pneg %p252
      $region66: #{_lambda_.1} parent=63 // pred_check_branch
        %1557 = sbr.rel (%p1555) target = $region68
      $region67: #{_lambda_.1} parent=63 // pred_region
        %s1558 = smul.u32 3, %s27
        %p1559 = scmp.lt.s32.totalorder %s26, 1
        %s1560 = scalar_select %p1559, %s26, 1
        %p1561 = scmp.lt.s32.totalorder %s1558, 2
        %s1562 = scalar_select %p1561, %s1558, 2
        %s1563 = smul.addr %s1560, 3
        %s1564 = sadd.s32 %s1562, %s1563
        %s1565 = smul.addr %s1564, 8
        %s1566 = scalar_lea.vmem %s9, %s1565
      $region68: #{_lambda_.1} parent=63 // pred_fallthru
        _
    $region64: #{_lambda_.1} parent=5 // pred_fallthru
      _
  $region6: #{_lambda_.1} parent=0 // loop_footer
    %s19 = sadd.s32 1, %s15
  $region7: #{_lambda_.1} parent=0 // loop_footer_branch
    %14 = sbr.rel target = $region3
  $region8: #{_lambda_.1} parent=0 // loop_exit
    _

</llo_original>
